<compile_context>
chip_gen: v7x
topology: tpu7x:2x2x1
jax: 0.10.0
libtpu: 0.0.40
codegen_flags: <defaults>
</compile_context>

<pallas_src>
import jax
import jax.numpy as jnp
from jax.experimental import pallas as pl
from jax.experimental.pallas import tpu as pltpu

_EPS = 1e-5  # nn.LayerNorm default


def _sigmoid(v):
    # 1/(1+exp(-v)) rewritten as a single tanh (EUP slot) + FMA; avoids the divide.
    return 0.5 * jnp.tanh(0.5 * v) + 0.5


def _lstm_predictor_kernel(
    lm1_ref,     # [B, 1]   i32: clip(lengths, 1, T) - 1 (clamped on host), VMEM
    x_ref,       # [T*B, F] f32: time-major flattened input (row = t*B + b), VMEM
    wih_ref,     # [F, 8H]  bf16: [W_ih_fwd^T | W_ih_rev^T], LN gamma folded in
    whh_ref,     # [H, 4H]  bf16: W_hh_fwd^T
    bfb_ref,     # [1, 8H]  f32: [b_ih_f+b_hh_f | b_ih_r+b_hh_r] + LN beta projected
    w1_ref,      # [2H, H]  f32: fc1 W^T
    head_ref,    # [5, H]   f32: rows = b1, ln2_g, ln2_b, fc2_w_row, (b2 at [4,0])
    o_ref,       # [B, 1]   f32 output
    proj_ref,    # scratch [T, B, 8H] f32: per-timestep fused pre-activations
):
    TB, F = x_ref.shape
    B = lm1_ref.shape[0]
    T = TB // B
    H = whh_ref.shape[0]
    H4 = 4 * H

    # ---- hoisted: LayerNorm (affine pre-folded into wih/bfb) + fused fwd/rev ----
    # ---- input projection for ALL timesteps in one bf16 MXU matmul          ----
    x = x_ref[...]
    mu = jnp.mean(x, axis=-1, keepdims=True)
    var = jnp.mean((x - mu) ** 2, axis=-1, keepdims=True)
    xn = (x - mu) * jax.lax.rsqrt(var + _EPS)
    proj = (jnp.dot(xn.astype(jnp.bfloat16), wih_ref[...],
                    preferred_element_type=jnp.float32)
            + bfb_ref[...])                                              # [T*B, 8H]
    # One-time store into a time-indexed scratch so every recurrence step does a
    # plain sublane-aligned load (proj_ref[t]) instead of slicing a live value at
    # non-8-aligned sublane offsets.  Off the h->h critical path.
    for t in range(T):
        proj_ref[t] = proj[t * B:(t + 1) * B, :]

    whh = whh_ref[...]                                                   # [H,4H] bf16
    lm1 = lm1_ref[...]                                                   # [B, 1] i32

    # ---- forward recurrence, fully unrolled (T static).  Body = one fused MXU ----
    # ---- push (h @ W_hh) + f32 gate math + two selects on free VPU slots      ----
    h = jnp.zeros((B, H), jnp.float32)
    c = jnp.zeros((B, H), jnp.float32)
    h_sel = jnp.zeros((B, H), jnp.float32)      # forward h at t = lengths-1
    g_sel = jnp.zeros((B, H4), jnp.float32)     # reverse pre-activations at t = lengths-1
    for t in range(T):                          # == lax.fori_loop(..., unroll=True)
        row = proj_ref[t]                                                # [B, 8H]
        gates = row[:, 0:H4] + jnp.dot(h.astype(jnp.bfloat16), whh,
                                       preferred_element_type=jnp.float32)
        i = _sigmoid(gates[:, 0:H])             # PyTorch gate order: i, f, g, o
        f = _sigmoid(gates[:, H:2 * H])
        g = jnp.tanh(gates[:, 2 * H:3 * H])
        o = _sigmoid(gates[:, 3 * H:4 * H])
        c = f * c + i * g
        h = o * jnp.tanh(c)
        m = lm1 == t                            # [B, 1]: true exactly once per row
        h_sel = jnp.where(m, h, h_sel)          # freeze forward h at lengths-1
        g_sel = jnp.where(m, row[:, H4:], g_sel)

    # ---- reverse direction at t = lengths-1: first reverse step from zero state, ----
    # ---- so W_hh_rev drops out and the f gate (c_prev = 0) is never used         ----
    i_b = _sigmoid(g_sel[:, 0:H])
    g_b = jnp.tanh(g_sel[:, 2 * H:3 * H])
    o_b = _sigmoid(g_sel[:, 3 * H:4 * H])
    h_bwd = o_b * jnp.tanh(i_b * g_b)

    # ---- fc head (f32): single fused [B,2H] @ [2H,H] matmul, LN, ReLU, fc2 ----
    hcat = jnp.concatenate([h_sel, h_bwd], axis=-1)                      # [B, 2H]
    y = (jnp.dot(hcat, w1_ref[...], preferred_element_type=jnp.float32)
         + head_ref[0:1, :])                                             # + b1
    mu2 = jnp.mean(y, axis=-1, keepdims=True)
    var2 = jnp.mean((y - mu2) ** 2, axis=-1, keepdims=True)
    y = (y - mu2) * jax.lax.rsqrt(var2 + _EPS) * head_ref[1:2, :] + head_ref[2:3, :]
    y = jnp.maximum(y, 0.0)
    # TODO(synk): nn.Dropout uses train-mode RNG; implemented as eval-mode identity.
    o_ref[...] = (jnp.sum(y * head_ref[3:4, :], axis=-1, keepdims=True)  # fc2 (H->1)
                  + head_ref[4:5, 0:1])


def simple_lstm_predictor(x, lengths, params):
    """x: [B, T, F] float32 (batch_first); lengths: [B] int (clamped into [1, T])."""
    B, T, F = x.shape
    H = params["whh_f"].shape[0]

    # Time-major flatten (row = t*B + b).
    # TODO(synk): at production sizes store x time-major upstream (or fold this
    # transpose into the producer) so the extra XLA op + HBM round trip disappears.
    x_flat = jnp.transpose(x, (1, 0, 2)).reshape(T * B, F).astype(jnp.float32)
    # Clamp once, host side (packed sequences require length >= 1; length > T would
    # otherwise corrupt the select).
    lm1 = (jnp.clip(lengths.astype(jnp.int32), 1, T) - 1).reshape(B, 1)

    vmem = lambda: pl.BlockSpec(memory_space=pltpu.MemorySpace.VMEM)

    # Gridless single invocation: everything fits comfortably in VMEM at these
    # shapes.  When scaling B, add a leading batch grid axis with
    # dimension_semantics=("parallel",) (uses both v7x TensorCores) and shrink the
    # scratch (bf16 / 3H reverse columns / T-tiling) against v7x's 64 MiB VMEM.
    return pl.pallas_call(
        _lstm_predictor_kernel,
        out_shape=jax.ShapeDtypeStruct((B, 1), jnp.float32),
        in_specs=[vmem() for _ in range(7)],
        out_specs=vmem(),
        scratch_shapes=[
            pltpu.VMEM((T, B, 8 * H), jnp.float32),   # fused pre-activations
        ],
    )(lm1, x_flat, params["wih_fb"], params["whh_f"], params["b_fb"],
      params["w1"], params["head"])


def init_params(key, input_size, hidden_size):
    """Deterministic init matching the module's __init__ shapes, packed for the
    kernel.  The LayerNorm affine (gamma/beta, identity at init) is folded into the
    input-projection weights/bias.  MXU operands are bf16 (precision tradeoff);
    biases, fc head and LayerNorm-2 params stay f32."""
    F, H = input_size, hidden_size
    keys = jax.random.split(key, 11)
    k = 1.0 / float(H) ** 0.5

    def u(kk, shape, scale):
        return jax.random.uniform(kk, shape, jnp.float32, -scale, scale)

    wih_f = u(keys[0], (4 * H, F), k)
    whh_f = u(keys[1], (4 * H, H), k)
    bih_f = u(keys[2], (4 * H,), k)
    bhh_f = u(keys[3], (4 * H,), k)
    wih_b = u(keys[4], (4 * H, F), k)
    # weight_hh_l0_reverse exists in the module but never reaches the gathered
    # t = lengths-1 output (reverse h_prev is zero there), so it is not materialized.
    bih_b = u(keys[5], (4 * H,), k)
    bhh_b = u(keys[6], (4 * H,), k)
    k1 = 1.0 / float(2 * H) ** 0.5
    w1 = u(keys[7], (H, 2 * H), k1)
    b1 = u(keys[8], (H,), k1)
    k2 = 1.0 / float(H) ** 0.5
    w2 = u(keys[9], (1, H), k2)
    b2 = u(keys[10], (1,), k2)

    # nn.LayerNorm(input_size) affine params (identity at init) -- folded below.
    ln_g = jnp.ones((F,), jnp.float32)
    ln_b = jnp.zeros((F,), jnp.float32)

    wih_cat = jnp.concatenate([wih_f.T, wih_b.T], axis=1)              # [F, 8H] f32
    wih_fb = (ln_g[:, None] * wih_cat).astype(jnp.bfloat16)            # gamma folded
    b_fb = (jnp.concatenate([bih_f + bhh_f, bih_b + bhh_b])
            + ln_b @ wih_cat).reshape(1, 8 * H)                        # beta folded

    head = jnp.stack([
        b1,                                              # fc1 bias
        jnp.ones((H,), jnp.float32),                     # ln2 gamma
        jnp.zeros((H,), jnp.float32),                    # ln2 beta
        w2[0],                                           # fc2 weight row
        jnp.zeros((H,), jnp.float32).at[0].set(b2[0]),   # fc2 bias at [4, 0]
    ])                                                   # [5, H]

    return {
        "wih_fb": wih_fb,                        # [F, 8H] bf16 (fused fwd|rev, LN folded)
        "whh_f": whh_f.T.astype(jnp.bfloat16),   # [H, 4H] bf16
        "b_fb": b_fb,                            # [1, 8H] f32
        "w1": w1.T,                              # [2H, H] f32
        "head": head,                            # [5, H]  f32
    }


if __name__ == "__main__":
    # config: input_size=16, hidden_size=32, num_layers=1, dropout inactive (eval).
    B, T, F, H = 2, 8, 16, 32
    key = jax.random.PRNGKey(0)
    k_param, k_x = jax.random.split(key)
    params = init_params(k_param, F, H)
    x = jax.random.normal(k_x, (B, T, F), jnp.float32)
    lengths = jnp.array([T, 5], jnp.int32)      # variable valid lengths, like packing

    out = simple_lstm_predictor(x, lengths, params)
    out = jax.block_until_ready(out)
    assert out.shape == (B, 1) and bool(jnp.all(jnp.isfinite(out)))
    print("KERNEL_OK")
</pallas_src>

<mosaic_0001>
module attributes {stable_mosaic.version = 11 : i64} {
  func.func @_lstm_predictor_kernel(%arg0: memref<2x1xi32, #tpu.memory_space<vmem>>, %arg1: memref<16x16xf32, #tpu.memory_space<vmem>>, %arg2: memref<16x256xbf16, #tpu.memory_space<vmem>>, %arg3: memref<32x128xbf16, #tpu.memory_space<vmem>>, %arg4: memref<1x256xf32, #tpu.memory_space<vmem>>, %arg5: memref<64x32xf32, #tpu.memory_space<vmem>>, %arg6: memref<5x32xf32, #tpu.memory_space<vmem>>, %arg7: memref<2x1xf32, #tpu.memory_space<vmem>>, %arg8: memref<8x2x256xf32, #tpu.memory_space<vmem>>) attributes {dimension_semantics = [], scalar_prefetch = 0 : i64, scratch_operands = 1 : i64, tpu.core_type = #tpu.core_type<tc>} {
    %c0 = arith.constant 0 : index
    %c0_0 = arith.constant 0 : index
    %0 = vector.load %arg1[%c0, %c0_0] : memref<16x16xf32, #tpu.memory_space<vmem>>, vector<16x16xf32>
    %cst = arith.constant dense<0.000000e+00> : vector<16xf32>
    %1 = vector.multi_reduction <add>, %0, %cst [1] : vector<16x16xf32> to vector<16xf32>
    %2 = vector.shape_cast %1 : vector<16xf32> to vector<16x1xf32>
    %cst_1 = arith.constant 1.600000e+01 : f32
    %3 = vector.broadcast %cst_1 : f32 to vector<16x1xf32>
    %4 = arith.divf %2, %3 : vector<16x1xf32>
    %5 = vector.broadcast %4 : vector<16x1xf32> to vector<16x16xf32>
    %6 = arith.subf %0, %5 : vector<16x16xf32>
    %7 = arith.mulf %6, %6 : vector<16x16xf32>
    %cst_2 = arith.constant dense<0.000000e+00> : vector<16xf32>
    %8 = vector.multi_reduction <add>, %7, %cst_2 [1] : vector<16x16xf32> to vector<16xf32>
    %9 = vector.shape_cast %8 : vector<16xf32> to vector<16x1xf32>
    %cst_3 = arith.constant 1.600000e+01 : f32
    %10 = vector.broadcast %cst_3 : f32 to vector<16x1xf32>
    %11 = arith.divf %9, %10 : vector<16x1xf32>
    %12 = vector.broadcast %4 : vector<16x1xf32> to vector<16x16xf32>
    %13 = arith.subf %0, %12 : vector<16x16xf32>
    %cst_4 = arith.constant 9.99999974E-6 : f32
    %14 = vector.broadcast %cst_4 : f32 to vector<16x1xf32>
    %15 = arith.addf %11, %14 : vector<16x1xf32>
    %16 = math.rsqrt %15 : vector<16x1xf32>
    %17 = vector.broadcast %16 : vector<16x1xf32> to vector<16x16xf32>
    %18 = arith.mulf %13, %17 : vector<16x16xf32>
    %19 = arith.truncf %18 : vector<16x16xf32> to vector<16x16xbf16>
    %c0_5 = arith.constant 0 : index
    %c0_6 = arith.constant 0 : index
    %20 = vector.load %arg2[%c0_5, %c0_6] : memref<16x256xbf16, #tpu.memory_space<vmem>>, vector<16x256xbf16>
    %cst_7 = arith.constant dense<0.000000e+00> : vector<16x256xf32>
    %21 = tpu.matmul %19, %20, %cst_7 {dimension_numbers = #tpu.dot_dimension_numbers<[1], [0], [0], [1], [0, 0, 1, 1], [], []>} : vector<16x16xbf16>, vector<16x256xbf16>, vector<16x256xf32> -> vector<16x256xf32>
    %c0_8 = arith.constant 0 : index
    %c0_9 = arith.constant 0 : index
    %22 = vector.load %arg4[%c0_8, %c0_9] : memref<1x256xf32, #tpu.memory_space<vmem>>, vector<1x256xf32>
    %23 = vector.broadcast %22 : vector<1x256xf32> to vector<16x256xf32>
    %24 = arith.addf %21, %23 : vector<16x256xf32>
    %25 = vector.extract_strided_slice %24 {offsets = [0, 0], sizes = [2, 256], strides = [1, 1]} : vector<16x256xf32> to vector<2x256xf32>
    %c0_10 = arith.constant 0 : index
    %c0_11 = arith.constant 0 : index
    %c0_12 = arith.constant 0 : index
    %26 = vector.load %arg8[%c0_10, %c0_11, %c0_12] : memref<8x2x256xf32, #tpu.memory_space<vmem>>, vector<1x2x256xf32>
    %27 = vector.shape_cast %26 : vector<1x2x256xf32> to vector<2x256xf32>
    %28 = vector.shape_cast %25 : vector<2x256xf32> to vector<1x2x256xf32>
    tpu.vector_store %arg8[%c0_10, %c0_11, %c0_12], %28 {strides = array<i32>} : memref<8x2x256xf32, #tpu.memory_space<vmem>>, vector<1x2x256xf32>,
    %29 = vector.extract_strided_slice %24 {offsets = [2, 0], sizes = [2, 256], strides = [1, 1]} : vector<16x256xf32> to vector<2x256xf32>
    %c1 = arith.constant 1 : index
    %c0_13 = arith.constant 0 : index
    %c0_14 = arith.constant 0 : index
    %30 = vector.load %arg8[%c1, %c0_13, %c0_14] : memref<8x2x256xf32, #tpu.memory_space<vmem>>, vector<1x2x256xf32>
    %31 = vector.shape_cast %30 : vector<1x2x256xf32> to vector<2x256xf32>
    %32 = vector.shape_cast %29 : vector<2x256xf32> to vector<1x2x256xf32>
    tpu.vector_store %arg8[%c1, %c0_13, %c0_14], %32 {strides = array<i32>} : memref<8x2x256xf32, #tpu.memory_space<vmem>>, vector<1x2x256xf32>,
    %33 = vector.extract_strided_slice %24 {offsets = [4, 0], sizes = [2, 256], strides = [1, 1]} : vector<16x256xf32> to vector<2x256xf32>
    %c2 = arith.constant 2 : index
    %c0_15 = arith.constant 0 : index
    %c0_16 = arith.constant 0 : index
    %34 = vector.load %arg8[%c2, %c0_15, %c0_16] : memref<8x2x256xf32, #tpu.memory_space<vmem>>, vector<1x2x256xf32>
    %35 = vector.shape_cast %34 : vector<1x2x256xf32> to vector<2x256xf32>
    %36 = vector.shape_cast %33 : vector<2x256xf32> to vector<1x2x256xf32>
    tpu.vector_store %arg8[%c2, %c0_15, %c0_16], %36 {strides = array<i32>} : memref<8x2x256xf32, #tpu.memory_space<vmem>>, vector<1x2x256xf32>,
    %37 = vector.extract_strided_slice %24 {offsets = [6, 0], sizes = [2, 256], strides = [1, 1]} : vector<16x256xf32> to vector<2x256xf32>
    %c3 = arith.constant 3 : index
    %c0_17 = arith.constant 0 : index
    %c0_18 = arith.constant 0 : index
    %38 = vector.load %arg8[%c3, %c0_17, %c0_18] : memref<8x2x256xf32, #tpu.memory_space<vmem>>, vector<1x2x256xf32>
    %39 = vector.shape_cast %38 : vector<1x2x256xf32> to vector<2x256xf32>
    %40 = vector.shape_cast %37 : vector<2x256xf32> to vector<1x2x256xf32>
    tpu.vector_store %arg8[%c3, %c0_17, %c0_18], %40 {strides = array<i32>} : memref<8x2x256xf32, #tpu.memory_space<vmem>>, vector<1x2x256xf32>,
    %41 = vector.extract_strided_slice %24 {offsets = [8, 0], sizes = [2, 256], strides = [1, 1]} : vector<16x256xf32> to vector<2x256xf32>
    %c4 = arith.constant 4 : index
    %c0_19 = arith.constant 0 : index
    %c0_20 = arith.constant 0 : index
    %42 = vector.load %arg8[%c4, %c0_19, %c0_20] : memref<8x2x256xf32, #tpu.memory_space<vmem>>, vector<1x2x256xf32>
    %43 = vector.shape_cast %42 : vector<1x2x256xf32> to vector<2x256xf32>
    %44 = vector.shape_cast %41 : vector<2x256xf32> to vector<1x2x256xf32>
    tpu.vector_store %arg8[%c4, %c0_19, %c0_20], %44 {strides = array<i32>} : memref<8x2x256xf32, #tpu.memory_space<vmem>>, vector<1x2x256xf32>,
    %45 = vector.extract_strided_slice %24 {offsets = [10, 0], sizes = [2, 256], strides = [1, 1]} : vector<16x256xf32> to vector<2x256xf32>
    %c5 = arith.constant 5 : index
    %c0_21 = arith.constant 0 : index
    %c0_22 = arith.constant 0 : index
    %46 = vector.load %arg8[%c5, %c0_21, %c0_22] : memref<8x2x256xf32, #tpu.memory_space<vmem>>, vector<1x2x256xf32>
    %47 = vector.shape_cast %46 : vector<1x2x256xf32> to vector<2x256xf32>
    %48 = vector.shape_cast %45 : vector<2x256xf32> to vector<1x2x256xf32>
    tpu.vector_store %arg8[%c5, %c0_21, %c0_22], %48 {strides = array<i32>} : memref<8x2x256xf32, #tpu.memory_space<vmem>>, vector<1x2x256xf32>,
    %49 = vector.extract_strided_slice %24 {offsets = [12, 0], sizes = [2, 256], strides = [1, 1]} : vector<16x256xf32> to vector<2x256xf32>
    %c6 = arith.constant 6 : index
    %c0_23 = arith.constant 0 : index
    %c0_24 = arith.constant 0 : index
    %50 = vector.load %arg8[%c6, %c0_23, %c0_24] : memref<8x2x256xf32, #tpu.memory_space<vmem>>, vector<1x2x256xf32>
    %51 = vector.shape_cast %50 : vector<1x2x256xf32> to vector<2x256xf32>
    %52 = vector.shape_cast %49 : vector<2x256xf32> to vector<1x2x256xf32>
    tpu.vector_store %arg8[%c6, %c0_23, %c0_24], %52 {strides = array<i32>} : memref<8x2x256xf32, #tpu.memory_space<vmem>>, vector<1x2x256xf32>,
    %53 = vector.extract_strided_slice %24 {offsets = [14, 0], sizes = [2, 256], strides = [1, 1]} : vector<16x256xf32> to vector<2x256xf32>
    %c7 = arith.constant 7 : index
    %c0_25 = arith.constant 0 : index
    %c0_26 = arith.constant 0 : index
    %54 = vector.load %arg8[%c7, %c0_25, %c0_26] : memref<8x2x256xf32, #tpu.memory_space<vmem>>, vector<1x2x256xf32>
    %55 = vector.shape_cast %54 : vector<1x2x256xf32> to vector<2x256xf32>
    %56 = vector.shape_cast %53 : vector<2x256xf32> to vector<1x2x256xf32>
    tpu.vector_store %arg8[%c7, %c0_25, %c0_26], %56 {strides = array<i32>} : memref<8x2x256xf32, #tpu.memory_space<vmem>>, vector<1x2x256xf32>,
    %c0_27 = arith.constant 0 : index
    %c0_28 = arith.constant 0 : index
    %57 = vector.load %arg3[%c0_27, %c0_28] : memref<32x128xbf16, #tpu.memory_space<vmem>>, vector<32x128xbf16>
    %c0_29 = arith.constant 0 : index
    %c0_30 = arith.constant 0 : index
    %58 = vector.load %arg0[%c0_29, %c0_30] : memref<2x1xi32, #tpu.memory_space<vmem>>, vector<2x1xi32>
    %cst_31 = arith.constant 0.000000e+00 : f32
    %59 = vector.broadcast %cst_31 : f32 to vector<2x32xf32>
    %cst_32 = arith.constant 0.000000e+00 : f32
    %60 = vector.broadcast %cst_32 : f32 to vector<2x32xf32>
    %cst_33 = arith.constant 0.000000e+00 : f32
    %61 = vector.broadcast %cst_33 : f32 to vector<2x32xf32>
    %cst_34 = arith.constant 0.000000e+00 : f32
    %62 = vector.broadcast %cst_34 : f32 to vector<2x128xf32>
    %c0_35 = arith.constant 0 : index
    %c0_36 = arith.constant 0 : index
    %c0_37 = arith.constant 0 : index
    %63 = vector.load %arg8[%c0_35, %c0_36, %c0_37] : memref<8x2x256xf32, #tpu.memory_space<vmem>>, vector<1x2x256xf32>
    %64 = vector.shape_cast %63 : vector<1x2x256xf32> to vector<2x256xf32>
    %65 = vector.extract_strided_slice %64 {offsets = [0, 0], sizes = [2, 128], strides = [1, 1]} : vector<2x256xf32> to vector<2x128xf32>
    %66 = arith.truncf %59 : vector<2x32xf32> to vector<2x32xbf16>
    %cst_38 = arith.constant dense<0.000000e+00> : vector<2x128xf32>
    %67 = tpu.matmul %66, %57, %cst_38 {dimension_numbers = #tpu.dot_dimension_numbers<[1], [0], [0], [1], [0, 0, 1, 1], [], []>} : vector<2x32xbf16>, vector<32x128xbf16>, vector<2x128xf32> -> vector<2x128xf32>
    %68 = arith.addf %65, %67 : vector<2x128xf32>
    %69 = vector.extract_strided_slice %68 {offsets = [0, 0], sizes = [2, 32], strides = [1, 1]} : vector<2x128xf32> to vector<2x32xf32>
    %cst_39 = arith.constant 5.000000e-01 : f32
    %70 = vector.broadcast %cst_39 : f32 to vector<2x32xf32>
    %71 = arith.mulf %70, %69 : vector<2x32xf32>
    %72 = math.tanh %71 : vector<2x32xf32>
    %cst_40 = arith.constant 5.000000e-01 : f32
    %73 = vector.broadcast %cst_40 : f32 to vector<2x32xf32>
    %74 = arith.mulf %73, %72 : vector<2x32xf32>
    %cst_41 = arith.constant 5.000000e-01 : f32
    %75 = vector.broadcast %cst_41 : f32 to vector<2x32xf32>
    %76 = arith.addf %74, %75 : vector<2x32xf32>
    %77 = vector.extract_strided_slice %68 {offsets = [0, 32], sizes = [2, 32], strides = [1, 1]} : vector<2x128xf32> to vector<2x32xf32>
    %cst_42 = arith.constant 5.000000e-01 : f32
    %78 = vector.broadcast %cst_42 : f32 to vector<2x32xf32>
    %79 = arith.mulf %78, %77 : vector<2x32xf32>
    %80 = math.tanh %79 : vector<2x32xf32>
    %cst_43 = arith.constant 5.000000e-01 : f32
    %81 = vector.broadcast %cst_43 : f32 to vector<2x32xf32>
    %82 = arith.mulf %81, %80 : vector<2x32xf32>
    %cst_44 = arith.constant 5.000000e-01 : f32
    %83 = vector.broadcast %cst_44 : f32 to vector<2x32xf32>
    %84 = arith.addf %82, %83 : vector<2x32xf32>
    %85 = vector.extract_strided_slice %68 {offsets = [0, 64], sizes = [2, 32], strides = [1, 1]} : vector<2x128xf32> to vector<2x32xf32>
    %86 = math.tanh %85 : vector<2x32xf32>
    %87 = vector.extract_strided_slice %68 {offsets = [0, 96], sizes = [2, 32], strides = [1, 1]} : vector<2x128xf32> to vector<2x32xf32>
    %cst_45 = arith.constant 5.000000e-01 : f32
    %88 = vector.broadcast %cst_45 : f32 to vector<2x32xf32>
    %89 = arith.mulf %88, %87 : vector<2x32xf32>
    %90 = math.tanh %89 : vector<2x32xf32>
    %cst_46 = arith.constant 5.000000e-01 : f32
    %91 = vector.broadcast %cst_46 : f32 to vector<2x32xf32>
    %92 = arith.mulf %91, %90 : vector<2x32xf32>
    %cst_47 = arith.constant 5.000000e-01 : f32
    %93 = vector.broadcast %cst_47 : f32 to vector<2x32xf32>
    %94 = arith.addf %92, %93 : vector<2x32xf32>
    %95 = arith.mulf %84, %60 : vector<2x32xf32>
    %96 = arith.mulf %76, %86 : vector<2x32xf32>
    %97 = arith.addf %95, %96 : vector<2x32xf32>
    %98 = math.tanh %97 : vector<2x32xf32>
    %99 = arith.mulf %94, %98 : vector<2x32xf32>
    %c0_i32 = arith.constant 0 : i32
    %100 = vector.broadcast %c0_i32 : i32 to vector<2x1xi32>
    %101 = arith.cmpi eq, %58, %100 : vector<2x1xi32>
    %102 = vector.shape_cast %101 : vector<2x1xi1> to vector<2x1xi1>
    %103 = vector.broadcast %102 : vector<2x1xi1> to vector<2x32xi1>
    %104 = arith.select %103, %99, %61 : vector<2x32xi1>, vector<2x32xf32>
    %105 = vector.extract_strided_slice %64 {offsets = [0, 128], sizes = [2, 128], strides = [1, 1]} : vector<2x256xf32> to vector<2x128xf32>
    %106 = vector.shape_cast %101 : vector<2x1xi1> to vector<2x1xi1>
    %107 = vector.broadcast %106 : vector<2x1xi1> to vector<2x128xi1>
    %108 = arith.select %107, %105, %62 : vector<2x128xi1>, vector<2x128xf32>
    %c1_48 = arith.constant 1 : index
    %c0_49 = arith.constant 0 : index
    %c0_50 = arith.constant 0 : index
    %109 = vector.load %arg8[%c1_48, %c0_49, %c0_50] : memref<8x2x256xf32, #tpu.memory_space<vmem>>, vector<1x2x256xf32>
    %110 = vector.shape_cast %109 : vector<1x2x256xf32> to vector<2x256xf32>
    %111 = vector.extract_strided_slice %110 {offsets = [0, 0], sizes = [2, 128], strides = [1, 1]} : vector<2x256xf32> to vector<2x128xf32>
    %112 = arith.truncf %99 : vector<2x32xf32> to vector<2x32xbf16>
    %cst_51 = arith.constant dense<0.000000e+00> : vector<2x128xf32>
    %113 = tpu.matmul %112, %57, %cst_51 {dimension_numbers = #tpu.dot_dimension_numbers<[1], [0], [0], [1], [0, 0, 1, 1], [], []>} : vector<2x32xbf16>, vector<32x128xbf16>, vector<2x128xf32> -> vector<2x128xf32>
    %114 = arith.addf %111, %113 : vector<2x128xf32>
    %115 = vector.extract_strided_slice %114 {offsets = [0, 0], sizes = [2, 32], strides = [1, 1]} : vector<2x128xf32> to vector<2x32xf32>
    %cst_52 = arith.constant 5.000000e-01 : f32
    %116 = vector.broadcast %cst_52 : f32 to vector<2x32xf32>
    %117 = arith.mulf %116, %115 : vector<2x32xf32>
    %118 = math.tanh %117 : vector<2x32xf32>
    %cst_53 = arith.constant 5.000000e-01 : f32
    %119 = vector.broadcast %cst_53 : f32 to vector<2x32xf32>
    %120 = arith.mulf %119, %118 : vector<2x32xf32>
    %cst_54 = arith.constant 5.000000e-01 : f32
    %121 = vector.broadcast %cst_54 : f32 to vector<2x32xf32>
    %122 = arith.addf %120, %121 : vector<2x32xf32>
    %123 = vector.extract_strided_slice %114 {offsets = [0, 32], sizes = [2, 32], strides = [1, 1]} : vector<2x128xf32> to vector<2x32xf32>
    %cst_55 = arith.constant 5.000000e-01 : f32
    %124 = vector.broadcast %cst_55 : f32 to vector<2x32xf32>
    %125 = arith.mulf %124, %123 : vector<2x32xf32>
    %126 = math.tanh %125 : vector<2x32xf32>
    %cst_56 = arith.constant 5.000000e-01 : f32
    %127 = vector.broadcast %cst_56 : f32 to vector<2x32xf32>
    %128 = arith.mulf %127, %126 : vector<2x32xf32>
    %cst_57 = arith.constant 5.000000e-01 : f32
    %129 = vector.broadcast %cst_57 : f32 to vector<2x32xf32>
    %130 = arith.addf %128, %129 : vector<2x32xf32>
    %131 = vector.extract_strided_slice %114 {offsets = [0, 64], sizes = [2, 32], strides = [1, 1]} : vector<2x128xf32> to vector<2x32xf32>
    %132 = math.tanh %131 : vector<2x32xf32>
    %133 = vector.extract_strided_slice %114 {offsets = [0, 96], sizes = [2, 32], strides = [1, 1]} : vector<2x128xf32> to vector<2x32xf32>
    %cst_58 = arith.constant 5.000000e-01 : f32
    %134 = vector.broadcast %cst_58 : f32 to vector<2x32xf32>
    %135 = arith.mulf %134, %133 : vector<2x32xf32>
    %136 = math.tanh %135 : vector<2x32xf32>
    %cst_59 = arith.constant 5.000000e-01 : f32
    %137 = vector.broadcast %cst_59 : f32 to vector<2x32xf32>
    %138 = arith.mulf %137, %136 : vector<2x32xf32>
    %cst_60 = arith.constant 5.000000e-01 : f32
    %139 = vector.broadcast %cst_60 : f32 to vector<2x32xf32>
    %140 = arith.addf %138, %139 : vector<2x32xf32>
    %141 = arith.mulf %130, %97 : vector<2x32xf32>
    %142 = arith.mulf %122, %132 : vector<2x32xf32>
    %143 = arith.addf %141, %142 : vector<2x32xf32>
    %144 = math.tanh %143 : vector<2x32xf32>
    %145 = arith.mulf %140, %144 : vector<2x32xf32>
    %c1_i32 = arith.constant 1 : i32
    %146 = vector.broadcast %c1_i32 : i32 to vector<2x1xi32>
    %147 = arith.cmpi eq, %58, %146 : vector<2x1xi32>
    %148 = vector.shape_cast %147 : vector<2x1xi1> to vector<2x1xi1>
    %149 = vector.broadcast %148 : vector<2x1xi1> to vector<2x32xi1>
    %150 = arith.select %149, %145, %104 : vector<2x32xi1>, vector<2x32xf32>
    %151 = vector.extract_strided_slice %110 {offsets = [0, 128], sizes = [2, 128], strides = [1, 1]} : vector<2x256xf32> to vector<2x128xf32>
    %152 = vector.shape_cast %147 : vector<2x1xi1> to vector<2x1xi1>
    %153 = vector.broadcast %152 : vector<2x1xi1> to vector<2x128xi1>
    %154 = arith.select %153, %151, %108 : vector<2x128xi1>, vector<2x128xf32>
    %c2_61 = arith.constant 2 : index
    %c0_62 = arith.constant 0 : index
    %c0_63 = arith.constant 0 : index
    %155 = vector.load %arg8[%c2_61, %c0_62, %c0_63] : memref<8x2x256xf32, #tpu.memory_space<vmem>>, vector<1x2x256xf32>
    %156 = vector.shape_cast %155 : vector<1x2x256xf32> to vector<2x256xf32>
    %157 = vector.extract_strided_slice %156 {offsets = [0, 0], sizes = [2, 128], strides = [1, 1]} : vector<2x256xf32> to vector<2x128xf32>
    %158 = arith.truncf %145 : vector<2x32xf32> to vector<2x32xbf16>
    %cst_64 = arith.constant dense<0.000000e+00> : vector<2x128xf32>
    %159 = tpu.matmul %158, %57, %cst_64 {dimension_numbers = #tpu.dot_dimension_numbers<[1], [0], [0], [1], [0, 0, 1, 1], [], []>} : vector<2x32xbf16>, vector<32x128xbf16>, vector<2x128xf32> -> vector<2x128xf32>
    %160 = arith.addf %157, %159 : vector<2x128xf32>
    %161 = vector.extract_strided_slice %160 {offsets = [0, 0], sizes = [2, 32], strides = [1, 1]} : vector<2x128xf32> to vector<2x32xf32>
    %cst_65 = arith.constant 5.000000e-01 : f32
    %162 = vector.broadcast %cst_65 : f32 to vector<2x32xf32>
    %163 = arith.mulf %162, %161 : vector<2x32xf32>
    %164 = math.tanh %163 : vector<2x32xf32>
    %cst_66 = arith.constant 5.000000e-01 : f32
    %165 = vector.broadcast %cst_66 : f32 to vector<2x32xf32>
    %166 = arith.mulf %165, %164 : vector<2x32xf32>
    %cst_67 = arith.constant 5.000000e-01 : f32
    %167 = vector.broadcast %cst_67 : f32 to vector<2x32xf32>
    %168 = arith.addf %166, %167 : vector<2x32xf32>
    %169 = vector.extract_strided_slice %160 {offsets = [0, 32], sizes = [2, 32], strides = [1, 1]} : vector<2x128xf32> to vector<2x32xf32>
    %cst_68 = arith.constant 5.000000e-01 : f32
    %170 = vector.broadcast %cst_68 : f32 to vector<2x32xf32>
    %171 = arith.mulf %170, %169 : vector<2x32xf32>
    %172 = math.tanh %171 : vector<2x32xf32>
    %cst_69 = arith.constant 5.000000e-01 : f32
    %173 = vector.broadcast %cst_69 : f32 to vector<2x32xf32>
    %174 = arith.mulf %173, %172 : vector<2x32xf32>
    %cst_70 = arith.constant 5.000000e-01 : f32
    %175 = vector.broadcast %cst_70 : f32 to vector<2x32xf32>
    %176 = arith.addf %174, %175 : vector<2x32xf32>
    %177 = vector.extract_strided_slice %160 {offsets = [0, 64], sizes = [2, 32], strides = [1, 1]} : vector<2x128xf32> to vector<2x32xf32>
    %178 = math.tanh %177 : vector<2x32xf32>
    %179 = vector.extract_strided_slice %160 {offsets = [0, 96], sizes = [2, 32], strides = [1, 1]} : vector<2x128xf32> to vector<2x32xf32>
    %cst_71 = arith.constant 5.000000e-01 : f32
    %180 = vector.broadcast %cst_71 : f32 to vector<2x32xf32>
    %181 = arith.mulf %180, %179 : vector<2x32xf32>
    %182 = math.tanh %181 : vector<2x32xf32>
    %cst_72 = arith.constant 5.000000e-01 : f32
    %183 = vector.broadcast %cst_72 : f32 to vector<2x32xf32>
    %184 = arith.mulf %183, %182 : vector<2x32xf32>
    %cst_73 = arith.constant 5.000000e-01 : f32
    %185 = vector.broadcast %cst_73 : f32 to vector<2x32xf32>
    %186 = arith.addf %184, %185 : vector<2x32xf32>
    %187 = arith.mulf %176, %143 : vector<2x32xf32>
    %188 = arith.mulf %168, %178 : vector<2x32xf32>
    %189 = arith.addf %187, %188 : vector<2x32xf32>
    %190 = math.tanh %189 : vector<2x32xf32>
    %191 = arith.mulf %186, %190 : vector<2x32xf32>
    %c2_i32 = arith.constant 2 : i32
    %192 = vector.broadcast %c2_i32 : i32 to vector<2x1xi32>
    %193 = arith.cmpi eq, %58, %192 : vector<2x1xi32>
    %194 = vector.shape_cast %193 : vector<2x1xi1> to vector<2x1xi1>
    %195 = vector.broadcast %194 : vector<2x1xi1> to vector<2x32xi1>
    %196 = arith.select %195, %191, %150 : vector<2x32xi1>, vector<2x32xf32>
    %197 = vector.extract_strided_slice %156 {offsets = [0, 128], sizes = [2, 128], strides = [1, 1]} : vector<2x256xf32> to vector<2x128xf32>
    %198 = vector.shape_cast %193 : vector<2x1xi1> to vector<2x1xi1>
    %199 = vector.broadcast %198 : vector<2x1xi1> to vector<2x128xi1>
    %200 = arith.select %199, %197, %154 : vector<2x128xi1>, vector<2x128xf32>
    %c3_74 = arith.constant 3 : index
    %c0_75 = arith.constant 0 : index
    %c0_76 = arith.constant 0 : index
    %201 = vector.load %arg8[%c3_74, %c0_75, %c0_76] : memref<8x2x256xf32, #tpu.memory_space<vmem>>, vector<1x2x256xf32>
    %202 = vector.shape_cast %201 : vector<1x2x256xf32> to vector<2x256xf32>
    %203 = vector.extract_strided_slice %202 {offsets = [0, 0], sizes = [2, 128], strides = [1, 1]} : vector<2x256xf32> to vector<2x128xf32>
    %204 = arith.truncf %191 : vector<2x32xf32> to vector<2x32xbf16>
    %cst_77 = arith.constant dense<0.000000e+00> : vector<2x128xf32>
    %205 = tpu.matmul %204, %57, %cst_77 {dimension_numbers = #tpu.dot_dimension_numbers<[1], [0], [0], [1], [0, 0, 1, 1], [], []>} : vector<2x32xbf16>, vector<32x128xbf16>, vector<2x128xf32> -> vector<2x128xf32>
    %206 = arith.addf %203, %205 : vector<2x128xf32>
    %207 = vector.extract_strided_slice %206 {offsets = [0, 0], sizes = [2, 32], strides = [1, 1]} : vector<2x128xf32> to vector<2x32xf32>
    %cst_78 = arith.constant 5.000000e-01 : f32
    %208 = vector.broadcast %cst_78 : f32 to vector<2x32xf32>
    %209 = arith.mulf %208, %207 : vector<2x32xf32>
    %210 = math.tanh %209 : vector<2x32xf32>
    %cst_79 = arith.constant 5.000000e-01 : f32
    %211 = vector.broadcast %cst_79 : f32 to vector<2x32xf32>
    %212 = arith.mulf %211, %210 : vector<2x32xf32>
    %cst_80 = arith.constant 5.000000e-01 : f32
    %213 = vector.broadcast %cst_80 : f32 to vector<2x32xf32>
    %214 = arith.addf %212, %213 : vector<2x32xf32>
    %215 = vector.extract_strided_slice %206 {offsets = [0, 32], sizes = [2, 32], strides = [1, 1]} : vector<2x128xf32> to vector<2x32xf32>
    %cst_81 = arith.constant 5.000000e-01 : f32
    %216 = vector.broadcast %cst_81 : f32 to vector<2x32xf32>
    %217 = arith.mulf %216, %215 : vector<2x32xf32>
    %218 = math.tanh %217 : vector<2x32xf32>
    %cst_82 = arith.constant 5.000000e-01 : f32
    %219 = vector.broadcast %cst_82 : f32 to vector<2x32xf32>
    %220 = arith.mulf %219, %218 : vector<2x32xf32>
    %cst_83 = arith.constant 5.000000e-01 : f32
    %221 = vector.broadcast %cst_83 : f32 to vector<2x32xf32>
    %222 = arith.addf %220, %221 : vector<2x32xf32>
    %223 = vector.extract_strided_slice %206 {offsets = [0, 64], sizes = [2, 32], strides = [1, 1]} : vector<2x128xf32> to vector<2x32xf32>
    %224 = math.tanh %223 : vector<2x32xf32>
    %225 = vector.extract_strided_slice %206 {offsets = [0, 96], sizes = [2, 32], strides = [1, 1]} : vector<2x128xf32> to vector<2x32xf32>
    %cst_84 = arith.constant 5.000000e-01 : f32
    %226 = vector.broadcast %cst_84 : f32 to vector<2x32xf32>
    %227 = arith.mulf %226, %225 : vector<2x32xf32>
    %228 = math.tanh %227 : vector<2x32xf32>
    %cst_85 = arith.constant 5.000000e-01 : f32
    %229 = vector.broadcast %cst_85 : f32 to vector<2x32xf32>
    %230 = arith.mulf %229, %228 : vector<2x32xf32>
    %cst_86 = arith.constant 5.000000e-01 : f32
    %231 = vector.broadcast %cst_86 : f32 to vector<2x32xf32>
    %232 = arith.addf %230, %231 : vector<2x32xf32>
    %233 = arith.mulf %222, %189 : vector<2x32xf32>
    %234 = arith.mulf %214, %224 : vector<2x32xf32>
    %235 = arith.addf %233, %234 : vector<2x32xf32>
    %236 = math.tanh %235 : vector<2x32xf32>
    %237 = arith.mulf %232, %236 : vector<2x32xf32>
    %c3_i32 = arith.constant 3 : i32
    %238 = vector.broadcast %c3_i32 : i32 to vector<2x1xi32>
    %239 = arith.cmpi eq, %58, %238 : vector<2x1xi32>
    %240 = vector.shape_cast %239 : vector<2x1xi1> to vector<2x1xi1>
    %241 = vector.broadcast %240 : vector<2x1xi1> to vector<2x32xi1>
    %242 = arith.select %241, %237, %196 : vector<2x32xi1>, vector<2x32xf32>
    %243 = vector.extract_strided_slice %202 {offsets = [0, 128], sizes = [2, 128], strides = [1, 1]} : vector<2x256xf32> to vector<2x128xf32>
    %244 = vector.shape_cast %239 : vector<2x1xi1> to vector<2x1xi1>
    %245 = vector.broadcast %244 : vector<2x1xi1> to vector<2x128xi1>
    %246 = arith.select %245, %243, %200 : vector<2x128xi1>, vector<2x128xf32>
    %c4_87 = arith.constant 4 : index
    %c0_88 = arith.constant 0 : index
    %c0_89 = arith.constant 0 : index
    %247 = vector.load %arg8[%c4_87, %c0_88, %c0_89] : memref<8x2x256xf32, #tpu.memory_space<vmem>>, vector<1x2x256xf32>
    %248 = vector.shape_cast %247 : vector<1x2x256xf32> to vector<2x256xf32>
    %249 = vector.extract_strided_slice %248 {offsets = [0, 0], sizes = [2, 128], strides = [1, 1]} : vector<2x256xf32> to vector<2x128xf32>
    %250 = arith.truncf %237 : vector<2x32xf32> to vector<2x32xbf16>
    %cst_90 = arith.constant dense<0.000000e+00> : vector<2x128xf32>
    %251 = tpu.matmul %250, %57, %cst_90 {dimension_numbers = #tpu.dot_dimension_numbers<[1], [0], [0], [1], [0, 0, 1, 1], [], []>} : vector<2x32xbf16>, vector<32x128xbf16>, vector<2x128xf32> -> vector<2x128xf32>
    %252 = arith.addf %249, %251 : vector<2x128xf32>
    %253 = vector.extract_strided_slice %252 {offsets = [0, 0], sizes = [2, 32], strides = [1, 1]} : vector<2x128xf32> to vector<2x32xf32>
    %cst_91 = arith.constant 5.000000e-01 : f32
    %254 = vector.broadcast %cst_91 : f32 to vector<2x32xf32>
    %255 = arith.mulf %254, %253 : vector<2x32xf32>
    %256 = math.tanh %255 : vector<2x32xf32>
    %cst_92 = arith.constant 5.000000e-01 : f32
    %257 = vector.broadcast %cst_92 : f32 to vector<2x32xf32>
    %258 = arith.mulf %257, %256 : vector<2x32xf32>
    %cst_93 = arith.constant 5.000000e-01 : f32
    %259 = vector.broadcast %cst_93 : f32 to vector<2x32xf32>
    %260 = arith.addf %258, %259 : vector<2x32xf32>
    %261 = vector.extract_strided_slice %252 {offsets = [0, 32], sizes = [2, 32], strides = [1, 1]} : vector<2x128xf32> to vector<2x32xf32>
    %cst_94 = arith.constant 5.000000e-01 : f32
    %262 = vector.broadcast %cst_94 : f32 to vector<2x32xf32>
    %263 = arith.mulf %262, %261 : vector<2x32xf32>
    %264 = math.tanh %263 : vector<2x32xf32>
    %cst_95 = arith.constant 5.000000e-01 : f32
    %265 = vector.broadcast %cst_95 : f32 to vector<2x32xf32>
    %266 = arith.mulf %265, %264 : vector<2x32xf32>
    %cst_96 = arith.constant 5.000000e-01 : f32
    %267 = vector.broadcast %cst_96 : f32 to vector<2x32xf32>
    %268 = arith.addf %266, %267 : vector<2x32xf32>
    %269 = vector.extract_strided_slice %252 {offsets = [0, 64], sizes = [2, 32], strides = [1, 1]} : vector<2x128xf32> to vector<2x32xf32>
    %270 = math.tanh %269 : vector<2x32xf32>
    %271 = vector.extract_strided_slice %252 {offsets = [0, 96], sizes = [2, 32], strides = [1, 1]} : vector<2x128xf32> to vector<2x32xf32>
    %cst_97 = arith.constant 5.000000e-01 : f32
    %272 = vector.broadcast %cst_97 : f32 to vector<2x32xf32>
    %273 = arith.mulf %272, %271 : vector<2x32xf32>
    %274 = math.tanh %273 : vector<2x32xf32>
    %cst_98 = arith.constant 5.000000e-01 : f32
    %275 = vector.broadcast %cst_98 : f32 to vector<2x32xf32>
    %276 = arith.mulf %275, %274 : vector<2x32xf32>
    %cst_99 = arith.constant 5.000000e-01 : f32
    %277 = vector.broadcast %cst_99 : f32 to vector<2x32xf32>
    %278 = arith.addf %276, %277 : vector<2x32xf32>
    %279 = arith.mulf %268, %235 : vector<2x32xf32>
    %280 = arith.mulf %260, %270 : vector<2x32xf32>
    %281 = arith.addf %279, %280 : vector<2x32xf32>
    %282 = math.tanh %281 : vector<2x32xf32>
    %283 = arith.mulf %278, %282 : vector<2x32xf32>
    %c4_i32 = arith.constant 4 : i32
    %284 = vector.broadcast %c4_i32 : i32 to vector<2x1xi32>
    %285 = arith.cmpi eq, %58, %284 : vector<2x1xi32>
    %286 = vector.shape_cast %285 : vector<2x1xi1> to vector<2x1xi1>
    %287 = vector.broadcast %286 : vector<2x1xi1> to vector<2x32xi1>
    %288 = arith.select %287, %283, %242 : vector<2x32xi1>, vector<2x32xf32>
    %289 = vector.extract_strided_slice %248 {offsets = [0, 128], sizes = [2, 128], strides = [1, 1]} : vector<2x256xf32> to vector<2x128xf32>
    %290 = vector.shape_cast %285 : vector<2x1xi1> to vector<2x1xi1>
    %291 = vector.broadcast %290 : vector<2x1xi1> to vector<2x128xi1>
    %292 = arith.select %291, %289, %246 : vector<2x128xi1>, vector<2x128xf32>
    %c5_100 = arith.constant 5 : index
    %c0_101 = arith.constant 0 : index
    %c0_102 = arith.constant 0 : index
    %293 = vector.load %arg8[%c5_100, %c0_101, %c0_102] : memref<8x2x256xf32, #tpu.memory_space<vmem>>, vector<1x2x256xf32>
    %294 = vector.shape_cast %293 : vector<1x2x256xf32> to vector<2x256xf32>
    %295 = vector.extract_strided_slice %294 {offsets = [0, 0], sizes = [2, 128], strides = [1, 1]} : vector<2x256xf32> to vector<2x128xf32>
    %296 = arith.truncf %283 : vector<2x32xf32> to vector<2x32xbf16>
    %cst_103 = arith.constant dense<0.000000e+00> : vector<2x128xf32>
    %297 = tpu.matmul %296, %57, %cst_103 {dimension_numbers = #tpu.dot_dimension_numbers<[1], [0], [0], [1], [0, 0, 1, 1], [], []>} : vector<2x32xbf16>, vector<32x128xbf16>, vector<2x128xf32> -> vector<2x128xf32>
    %298 = arith.addf %295, %297 : vector<2x128xf32>
    %299 = vector.extract_strided_slice %298 {offsets = [0, 0], sizes = [2, 32], strides = [1, 1]} : vector<2x128xf32> to vector<2x32xf32>
    %cst_104 = arith.constant 5.000000e-01 : f32
    %300 = vector.broadcast %cst_104 : f32 to vector<2x32xf32>
    %301 = arith.mulf %300, %299 : vector<2x32xf32>
    %302 = math.tanh %301 : vector<2x32xf32>
    %cst_105 = arith.constant 5.000000e-01 : f32
    %303 = vector.broadcast %cst_105 : f32 to vector<2x32xf32>
    %304 = arith.mulf %303, %302 : vector<2x32xf32>
    %cst_106 = arith.constant 5.000000e-01 : f32
    %305 = vector.broadcast %cst_106 : f32 to vector<2x32xf32>
    %306 = arith.addf %304, %305 : vector<2x32xf32>
    %307 = vector.extract_strided_slice %298 {offsets = [0, 32], sizes = [2, 32], strides = [1, 1]} : vector<2x128xf32> to vector<2x32xf32>
    %cst_107 = arith.constant 5.000000e-01 : f32
    %308 = vector.broadcast %cst_107 : f32 to vector<2x32xf32>
    %309 = arith.mulf %308, %307 : vector<2x32xf32>
    %310 = math.tanh %309 : vector<2x32xf32>
    %cst_108 = arith.constant 5.000000e-01 : f32
    %311 = vector.broadcast %cst_108 : f32 to vector<2x32xf32>
    %312 = arith.mulf %311, %310 : vector<2x32xf32>
    %cst_109 = arith.constant 5.000000e-01 : f32
    %313 = vector.broadcast %cst_109 : f32 to vector<2x32xf32>
    %314 = arith.addf %312, %313 : vector<2x32xf32>
    %315 = vector.extract_strided_slice %298 {offsets = [0, 64], sizes = [2, 32], strides = [1, 1]} : vector<2x128xf32> to vector<2x32xf32>
    %316 = math.tanh %315 : vector<2x32xf32>
    %317 = vector.extract_strided_slice %298 {offsets = [0, 96], sizes = [2, 32], strides = [1, 1]} : vector<2x128xf32> to vector<2x32xf32>
    %cst_110 = arith.constant 5.000000e-01 : f32
    %318 = vector.broadcast %cst_110 : f32 to vector<2x32xf32>
    %319 = arith.mulf %318, %317 : vector<2x32xf32>
    %320 = math.tanh %319 : vector<2x32xf32>
    %cst_111 = arith.constant 5.000000e-01 : f32
    %321 = vector.broadcast %cst_111 : f32 to vector<2x32xf32>
    %322 = arith.mulf %321, %320 : vector<2x32xf32>
    %cst_112 = arith.constant 5.000000e-01 : f32
    %323 = vector.broadcast %cst_112 : f32 to vector<2x32xf32>
    %324 = arith.addf %322, %323 : vector<2x32xf32>
    %325 = arith.mulf %314, %281 : vector<2x32xf32>
    %326 = arith.mulf %306, %316 : vector<2x32xf32>
    %327 = arith.addf %325, %326 : vector<2x32xf32>
    %328 = math.tanh %327 : vector<2x32xf32>
    %329 = arith.mulf %324, %328 : vector<2x32xf32>
    %c5_i32 = arith.constant 5 : i32
    %330 = vector.broadcast %c5_i32 : i32 to vector<2x1xi32>
    %331 = arith.cmpi eq, %58, %330 : vector<2x1xi32>
    %332 = vector.shape_cast %331 : vector<2x1xi1> to vector<2x1xi1>
    %333 = vector.broadcast %332 : vector<2x1xi1> to vector<2x32xi1>
    %334 = arith.select %333, %329, %288 : vector<2x32xi1>, vector<2x32xf32>
    %335 = vector.extract_strided_slice %294 {offsets = [0, 128], sizes = [2, 128], strides = [1, 1]} : vector<2x256xf32> to vector<2x128xf32>
    %336 = vector.shape_cast %331 : vector<2x1xi1> to vector<2x1xi1>
    %337 = vector.broadcast %336 : vector<2x1xi1> to vector<2x128xi1>
    %338 = arith.select %337, %335, %292 : vector<2x128xi1>, vector<2x128xf32>
    %c6_113 = arith.constant 6 : index
    %c0_114 = arith.constant 0 : index
    %c0_115 = arith.constant 0 : index
    %339 = vector.load %arg8[%c6_113, %c0_114, %c0_115] : memref<8x2x256xf32, #tpu.memory_space<vmem>>, vector<1x2x256xf32>
    %340 = vector.shape_cast %339 : vector<1x2x256xf32> to vector<2x256xf32>
    %341 = vector.extract_strided_slice %340 {offsets = [0, 0], sizes = [2, 128], strides = [1, 1]} : vector<2x256xf32> to vector<2x128xf32>
    %342 = arith.truncf %329 : vector<2x32xf32> to vector<2x32xbf16>
    %cst_116 = arith.constant dense<0.000000e+00> : vector<2x128xf32>
    %343 = tpu.matmul %342, %57, %cst_116 {dimension_numbers = #tpu.dot_dimension_numbers<[1], [0], [0], [1], [0, 0, 1, 1], [], []>} : vector<2x32xbf16>, vector<32x128xbf16>, vector<2x128xf32> -> vector<2x128xf32>
    %344 = arith.addf %341, %343 : vector<2x128xf32>
    %345 = vector.extract_strided_slice %344 {offsets = [0, 0], sizes = [2, 32], strides = [1, 1]} : vector<2x128xf32> to vector<2x32xf32>
    %cst_117 = arith.constant 5.000000e-01 : f32
    %346 = vector.broadcast %cst_117 : f32 to vector<2x32xf32>
    %347 = arith.mulf %346, %345 : vector<2x32xf32>
    %348 = math.tanh %347 : vector<2x32xf32>
    %cst_118 = arith.constant 5.000000e-01 : f32
    %349 = vector.broadcast %cst_118 : f32 to vector<2x32xf32>
    %350 = arith.mulf %349, %348 : vector<2x32xf32>
    %cst_119 = arith.constant 5.000000e-01 : f32
    %351 = vector.broadcast %cst_119 : f32 to vector<2x32xf32>
    %352 = arith.addf %350, %351 : vector<2x32xf32>
    %353 = vector.extract_strided_slice %344 {offsets = [0, 32], sizes = [2, 32], strides = [1, 1]} : vector<2x128xf32> to vector<2x32xf32>
    %cst_120 = arith.constant 5.000000e-01 : f32
    %354 = vector.broadcast %cst_120 : f32 to vector<2x32xf32>
    %355 = arith.mulf %354, %353 : vector<2x32xf32>
    %356 = math.tanh %355 : vector<2x32xf32>
    %cst_121 = arith.constant 5.000000e-01 : f32
    %357 = vector.broadcast %cst_121 : f32 to vector<2x32xf32>
    %358 = arith.mulf %357, %356 : vector<2x32xf32>
    %cst_122 = arith.constant 5.000000e-01 : f32
    %359 = vector.broadcast %cst_122 : f32 to vector<2x32xf32>
    %360 = arith.addf %358, %359 : vector<2x32xf32>
    %361 = vector.extract_strided_slice %344 {offsets = [0, 64], sizes = [2, 32], strides = [1, 1]} : vector<2x128xf32> to vector<2x32xf32>
    %362 = math.tanh %361 : vector<2x32xf32>
    %363 = vector.extract_strided_slice %344 {offsets = [0, 96], sizes = [2, 32], strides = [1, 1]} : vector<2x128xf32> to vector<2x32xf32>
    %cst_123 = arith.constant 5.000000e-01 : f32
    %364 = vector.broadcast %cst_123 : f32 to vector<2x32xf32>
    %365 = arith.mulf %364, %363 : vector<2x32xf32>
    %366 = math.tanh %365 : vector<2x32xf32>
    %cst_124 = arith.constant 5.000000e-01 : f32
    %367 = vector.broadcast %cst_124 : f32 to vector<2x32xf32>
    %368 = arith.mulf %367, %366 : vector<2x32xf32>
    %cst_125 = arith.constant 5.000000e-01 : f32
    %369 = vector.broadcast %cst_125 : f32 to vector<2x32xf32>
    %370 = arith.addf %368, %369 : vector<2x32xf32>
    %371 = arith.mulf %360, %327 : vector<2x32xf32>
    %372 = arith.mulf %352, %362 : vector<2x32xf32>
    %373 = arith.addf %371, %372 : vector<2x32xf32>
    %374 = math.tanh %373 : vector<2x32xf32>
    %375 = arith.mulf %370, %374 : vector<2x32xf32>
    %c6_i32 = arith.constant 6 : i32
    %376 = vector.broadcast %c6_i32 : i32 to vector<2x1xi32>
    %377 = arith.cmpi eq, %58, %376 : vector<2x1xi32>
    %378 = vector.shape_cast %377 : vector<2x1xi1> to vector<2x1xi1>
    %379 = vector.broadcast %378 : vector<2x1xi1> to vector<2x32xi1>
    %380 = arith.select %379, %375, %334 : vector<2x32xi1>, vector<2x32xf32>
    %381 = vector.extract_strided_slice %340 {offsets = [0, 128], sizes = [2, 128], strides = [1, 1]} : vector<2x256xf32> to vector<2x128xf32>
    %382 = vector.shape_cast %377 : vector<2x1xi1> to vector<2x1xi1>
    %383 = vector.broadcast %382 : vector<2x1xi1> to vector<2x128xi1>
    %384 = arith.select %383, %381, %338 : vector<2x128xi1>, vector<2x128xf32>
    %c7_126 = arith.constant 7 : index
    %c0_127 = arith.constant 0 : index
    %c0_128 = arith.constant 0 : index
    %385 = vector.load %arg8[%c7_126, %c0_127, %c0_128] : memref<8x2x256xf32, #tpu.memory_space<vmem>>, vector<1x2x256xf32>
    %386 = vector.shape_cast %385 : vector<1x2x256xf32> to vector<2x256xf32>
    %387 = vector.extract_strided_slice %386 {offsets = [0, 0], sizes = [2, 128], strides = [1, 1]} : vector<2x256xf32> to vector<2x128xf32>
    %388 = arith.truncf %375 : vector<2x32xf32> to vector<2x32xbf16>
    %cst_129 = arith.constant dense<0.000000e+00> : vector<2x128xf32>
    %389 = tpu.matmul %388, %57, %cst_129 {dimension_numbers = #tpu.dot_dimension_numbers<[1], [0], [0], [1], [0, 0, 1, 1], [], []>} : vector<2x32xbf16>, vector<32x128xbf16>, vector<2x128xf32> -> vector<2x128xf32>
    %390 = arith.addf %387, %389 : vector<2x128xf32>
    %391 = vector.extract_strided_slice %390 {offsets = [0, 0], sizes = [2, 32], strides = [1, 1]} : vector<2x128xf32> to vector<2x32xf32>
    %cst_130 = arith.constant 5.000000e-01 : f32
    %392 = vector.broadcast %cst_130 : f32 to vector<2x32xf32>
    %393 = arith.mulf %392, %391 : vector<2x32xf32>
    %394 = math.tanh %393 : vector<2x32xf32>
    %cst_131 = arith.constant 5.000000e-01 : f32
    %395 = vector.broadcast %cst_131 : f32 to vector<2x32xf32>
    %396 = arith.mulf %395, %394 : vector<2x32xf32>
    %cst_132 = arith.constant 5.000000e-01 : f32
    %397 = vector.broadcast %cst_132 : f32 to vector<2x32xf32>
    %398 = arith.addf %396, %397 : vector<2x32xf32>
    %399 = vector.extract_strided_slice %390 {offsets = [0, 32], sizes = [2, 32], strides = [1, 1]} : vector<2x128xf32> to vector<2x32xf32>
    %cst_133 = arith.constant 5.000000e-01 : f32
    %400 = vector.broadcast %cst_133 : f32 to vector<2x32xf32>
    %401 = arith.mulf %400, %399 : vector<2x32xf32>
    %402 = math.tanh %401 : vector<2x32xf32>
    %cst_134 = arith.constant 5.000000e-01 : f32
    %403 = vector.broadcast %cst_134 : f32 to vector<2x32xf32>
    %404 = arith.mulf %403, %402 : vector<2x32xf32>
    %cst_135 = arith.constant 5.000000e-01 : f32
    %405 = vector.broadcast %cst_135 : f32 to vector<2x32xf32>
    %406 = arith.addf %404, %405 : vector<2x32xf32>
    %407 = vector.extract_strided_slice %390 {offsets = [0, 64], sizes = [2, 32], strides = [1, 1]} : vector<2x128xf32> to vector<2x32xf32>
    %408 = math.tanh %407 : vector<2x32xf32>
    %409 = vector.extract_strided_slice %390 {offsets = [0, 96], sizes = [2, 32], strides = [1, 1]} : vector<2x128xf32> to vector<2x32xf32>
    %cst_136 = arith.constant 5.000000e-01 : f32
    %410 = vector.broadcast %cst_136 : f32 to vector<2x32xf32>
    %411 = arith.mulf %410, %409 : vector<2x32xf32>
    %412 = math.tanh %411 : vector<2x32xf32>
    %cst_137 = arith.constant 5.000000e-01 : f32
    %413 = vector.broadcast %cst_137 : f32 to vector<2x32xf32>
    %414 = arith.mulf %413, %412 : vector<2x32xf32>
    %cst_138 = arith.constant 5.000000e-01 : f32
    %415 = vector.broadcast %cst_138 : f32 to vector<2x32xf32>
    %416 = arith.addf %414, %415 : vector<2x32xf32>
    %417 = arith.mulf %406, %373 : vector<2x32xf32>
    %418 = arith.mulf %398, %408 : vector<2x32xf32>
    %419 = arith.addf %417, %418 : vector<2x32xf32>
    %420 = math.tanh %419 : vector<2x32xf32>
    %421 = arith.mulf %416, %420 : vector<2x32xf32>
    %c7_i32 = arith.constant 7 : i32
    %422 = vector.broadcast %c7_i32 : i32 to vector<2x1xi32>
    %423 = arith.cmpi eq, %58, %422 : vector<2x1xi32>
    %424 = vector.shape_cast %423 : vector<2x1xi1> to vector<2x1xi1>
    %425 = vector.broadcast %424 : vector<2x1xi1> to vector<2x32xi1>
    %426 = arith.select %425, %421, %380 : vector<2x32xi1>, vector<2x32xf32>
    %427 = vector.extract_strided_slice %386 {offsets = [0, 128], sizes = [2, 128], strides = [1, 1]} : vector<2x256xf32> to vector<2x128xf32>
    %428 = vector.shape_cast %423 : vector<2x1xi1> to vector<2x1xi1>
    %429 = vector.broadcast %428 : vector<2x1xi1> to vector<2x128xi1>
    %430 = arith.select %429, %427, %384 : vector<2x128xi1>, vector<2x128xf32>
    %431 = vector.extract_strided_slice %430 {offsets = [0, 0], sizes = [2, 32], strides = [1, 1]} : vector<2x128xf32> to vector<2x32xf32>
    %cst_139 = arith.constant 5.000000e-01 : f32
    %432 = vector.broadcast %cst_139 : f32 to vector<2x32xf32>
    %433 = arith.mulf %432, %431 : vector<2x32xf32>
    %434 = math.tanh %433 : vector<2x32xf32>
    %cst_140 = arith.constant 5.000000e-01 : f32
    %435 = vector.broadcast %cst_140 : f32 to vector<2x32xf32>
    %436 = arith.mulf %435, %434 : vector<2x32xf32>
    %cst_141 = arith.constant 5.000000e-01 : f32
    %437 = vector.broadcast %cst_141 : f32 to vector<2x32xf32>
    %438 = arith.addf %436, %437 : vector<2x32xf32>
    %439 = vector.extract_strided_slice %430 {offsets = [0, 64], sizes = [2, 32], strides = [1, 1]} : vector<2x128xf32> to vector<2x32xf32>
    %440 = math.tanh %439 : vector<2x32xf32>
    %441 = vector.extract_strided_slice %430 {offsets = [0, 96], sizes = [2, 32], strides = [1, 1]} : vector<2x128xf32> to vector<2x32xf32>
    %cst_142 = arith.constant 5.000000e-01 : f32
    %442 = vector.broadcast %cst_142 : f32 to vector<2x32xf32>
    %443 = arith.mulf %442, %441 : vector<2x32xf32>
    %444 = math.tanh %443 : vector<2x32xf32>
    %cst_143 = arith.constant 5.000000e-01 : f32
    %445 = vector.broadcast %cst_143 : f32 to vector<2x32xf32>
    %446 = arith.mulf %445, %444 : vector<2x32xf32>
    %cst_144 = arith.constant 5.000000e-01 : f32
    %447 = vector.broadcast %cst_144 : f32 to vector<2x32xf32>
    %448 = arith.addf %446, %447 : vector<2x32xf32>
    %449 = arith.mulf %438, %440 : vector<2x32xf32>
    %450 = math.tanh %449 : vector<2x32xf32>
    %451 = arith.mulf %448, %450 : vector<2x32xf32>
    %452 = tpu.concatenate %426, %451 in 1 : vector<2x32xf32>, vector<2x32xf32> -> vector<2x64xf32>
    %c0_145 = arith.constant 0 : index
    %c0_146 = arith.constant 0 : index
    %453 = vector.load %arg5[%c0_145, %c0_146] : memref<64x32xf32, #tpu.memory_space<vmem>>, vector<64x32xf32>
    %cst_147 = arith.constant dense<0.000000e+00> : vector<2x32xf32>
    %454 = tpu.matmul %452, %453, %cst_147 {dimension_numbers = #tpu.dot_dimension_numbers<[1], [0], [0], [1], [0, 0, 1, 1], [], []>} : vector<2x64xf32>, vector<64x32xf32>, vector<2x32xf32> -> vector<2x32xf32>
    %c0_148 = arith.constant 0 : index
    %c0_149 = arith.constant 0 : index
    %455 = vector.load %arg6[%c0_148, %c0_149] : memref<5x32xf32, #tpu.memory_space<vmem>>, vector<1x32xf32>
    %456 = vector.broadcast %455 : vector<1x32xf32> to vector<2x32xf32>
    %457 = arith.addf %454, %456 : vector<2x32xf32>
    %cst_150 = arith.constant dense<0.000000e+00> : vector<2xf32>
    %458 = vector.multi_reduction <add>, %457, %cst_150 [1] : vector<2x32xf32> to vector<2xf32>
    %459 = vector.shape_cast %458 : vector<2xf32> to vector<2x1xf32>
    %cst_151 = arith.constant 3.200000e+01 : f32
    %460 = vector.broadcast %cst_151 : f32 to vector<2x1xf32>
    %461 = arith.divf %459, %460 : vector<2x1xf32>
    %462 = vector.broadcast %461 : vector<2x1xf32> to vector<2x32xf32>
    %463 = arith.subf %457, %462 : vector<2x32xf32>
    %464 = arith.mulf %463, %463 : vector<2x32xf32>
    %cst_152 = arith.constant dense<0.000000e+00> : vector<2xf32>
    %465 = vector.multi_reduction <add>, %464, %cst_152 [1] : vector<2x32xf32> to vector<2xf32>
    %466 = vector.shape_cast %465 : vector<2xf32> to vector<2x1xf32>
    %cst_153 = arith.constant 3.200000e+01 : f32
    %467 = vector.broadcast %cst_153 : f32 to vector<2x1xf32>
    %468 = arith.divf %466, %467 : vector<2x1xf32>
    %469 = vector.broadcast %461 : vector<2x1xf32> to vector<2x32xf32>
    %470 = arith.subf %457, %469 : vector<2x32xf32>
    %cst_154 = arith.constant 9.99999974E-6 : f32
    %471 = vector.broadcast %cst_154 : f32 to vector<2x1xf32>
    %472 = arith.addf %468, %471 : vector<2x1xf32>
    %473 = math.rsqrt %472 : vector<2x1xf32>
    %474 = vector.broadcast %473 : vector<2x1xf32> to vector<2x32xf32>
    %475 = arith.mulf %470, %474 : vector<2x32xf32>
    %c1_155 = arith.constant 1 : index
    %c0_156 = arith.constant 0 : index
    %476 = vector.load %arg6[%c1_155, %c0_156] : memref<5x32xf32, #tpu.memory_space<vmem>>, vector<1x32xf32>
    %477 = vector.broadcast %476 : vector<1x32xf32> to vector<2x32xf32>
    %478 = arith.mulf %475, %477 : vector<2x32xf32>
    %c2_157 = arith.constant 2 : index
    %c0_158 = arith.constant 0 : index
    %479 = vector.load %arg6[%c2_157, %c0_158] : memref<5x32xf32, #tpu.memory_space<vmem>>, vector<1x32xf32>
    %480 = vector.broadcast %479 : vector<1x32xf32> to vector<2x32xf32>
    %481 = arith.addf %478, %480 : vector<2x32xf32>
    %cst_159 = arith.constant 0.000000e+00 : f32
    %482 = vector.broadcast %cst_159 : f32 to vector<2x32xf32>
    %483 = arith.maximumf %481, %482 : vector<2x32xf32>
    %c3_160 = arith.constant 3 : index
    %c0_161 = arith.constant 0 : index
    %484 = vector.load %arg6[%c3_160, %c0_161] : memref<5x32xf32, #tpu.memory_space<vmem>>, vector<1x32xf32>
    %485 = vector.broadcast %484 : vector<1x32xf32> to vector<2x32xf32>
    %486 = arith.mulf %483, %485 : vector<2x32xf32>
    %cst_162 = arith.constant dense<0.000000e+00> : vector<2xf32>
    %487 = vector.multi_reduction <add>, %486, %cst_162 [1] : vector<2x32xf32> to vector<2xf32>
    %488 = vector.shape_cast %487 : vector<2xf32> to vector<2x1xf32>
    %c4_163 = arith.constant 4 : index
    %c0_164 = arith.constant 0 : index
    %489 = vector.load %arg6[%c4_163, %c0_164] : memref<5x32xf32, #tpu.memory_space<vmem>>, vector<1x1xf32>
    %490 = vector.broadcast %489 : vector<1x1xf32> to vector<2x1xf32>
    %491 = arith.addf %488, %490 : vector<2x1xf32>
    %c0_165 = arith.constant 0 : index
    %c0_166 = arith.constant 0 : index
    %492 = vector.load %arg7[%c0_165, %c0_166] : memref<2x1xf32, #tpu.memory_space<vmem>>, vector<2x1xf32>
    tpu.vector_store %arg7[%c0_165, %c0_166], %491 {strides = array<i32>} : memref<2x1xf32, #tpu.memory_space<vmem>>, vector<2x1xf32>,
    return
  }
}

</mosaic_0001>

<llo_original>
// kernel: tpu_custom_call.1
$region0: #{tpu_custom_call.1}
  #allocation0 [shape = 'u32[]', space=smem, size = 0x4, offset = 0x4, fixed_abs, tag = 'smem constant byte address 0x4 - core index']
  #allocation1 [shape = 'u32[144,128]{1,0:T(1,128)}', space=vmem, size = 0x12000, scoped, tag = 'internal scratch']
  #allocation2 [shape = 'f32[8,2,256]{2,1,0:T(2,128)}', space=vmem, size = 0x4000, scoped, tag = 'scratch operand']
  %s0 = inlined_call_operand.vmem [shape: s32[2,1], index: 0, kind: input, shape index: {}]
  %s1 = inlined_call_operand.vmem [shape: f32[16,16], index: 1, kind: input, shape index: {}]
  %s2 = inlined_call_operand.vmem [shape: bf16[16,256], index: 2, kind: input, shape index: {}]
  %s3 = inlined_call_operand.vmem [shape: bf16[32,128], index: 3, kind: input, shape index: {}]
  %s4 = inlined_call_operand.vmem [shape: f32[1,256], index: 4, kind: input, shape index: {}]
  %s5 = inlined_call_operand.vmem [shape: f32[64,32], index: 5, kind: input, shape index: {}]
  %s6 = inlined_call_operand.vmem [shape: f32[5,32], index: 6, kind: input, shape index: {}]
  %s7 = inlined_call_operand.vmem [shape: f32[2,1], index: 7, kind: output, shape index: {}]
  %s8 = sld [smem:[#allocation0]]
  $region38: #{tpu_custom_call.1} parent=0
    _
  %s10 = ssub.s32 1, %s8
  %s11 = scalar_select 0, %s10, %s8
  // Predicated region
  $region2: #{tpu_custom_call.1} parent=0 // pred_check
    _
  $region3: #{tpu_custom_call.1} parent=0 // pred_check_branch
    %13 = sbr.rel (0) target = $region5
  $region4: #{tpu_custom_call.1} parent=0 // pred_region
    _
  $region5: #{tpu_custom_call.1} parent=0 // pred_fallthru
    _
  // Predicated region
  $region6: #{tpu_custom_call.1} parent=0 // pred_check
    _
  $region7: #{tpu_custom_call.1} parent=0 // pred_check_branch
    %15 = sbr.rel (0) target = $region9
  $region8: #{tpu_custom_call.1} parent=0 // pred_region
    _
  $region9: #{tpu_custom_call.1} parent=0 // pred_fallthru
    _
  // Predicated region
  $region10: #{tpu_custom_call.1} parent=0 // pred_check
    _
  $region11: #{tpu_custom_call.1} parent=0 // pred_check_branch
    %17 = sbr.rel (0) target = $region13
  $region12: #{tpu_custom_call.1} parent=0 // pred_region
    _
  $region13: #{tpu_custom_call.1} parent=0 // pred_fallthru
    _
  // Predicated region
  $region14: #{tpu_custom_call.1} parent=0 // pred_check
    _
  $region15: #{tpu_custom_call.1} parent=0 // pred_check_branch
    %19 = sbr.rel (0) target = $region17
  $region16: #{tpu_custom_call.1} parent=0 // pred_region
    _
  $region17: #{tpu_custom_call.1} parent=0 // pred_fallthru
    _
  // Predicated region
  $region18: #{tpu_custom_call.1} parent=0 // pred_check
    _
  $region19: #{tpu_custom_call.1} parent=0 // pred_check_branch
    %21 = sbr.rel (0) target = $region21
  $region20: #{tpu_custom_call.1} parent=0 // pred_region
    _
  $region21: #{tpu_custom_call.1} parent=0 // pred_fallthru
    _
  // Predicated region
  $region22: #{tpu_custom_call.1} parent=0 // pred_check
    _
  $region23: #{tpu_custom_call.1} parent=0 // pred_check_branch
    %23 = sbr.rel (0) target = $region25
  $region24: #{tpu_custom_call.1} parent=0 // pred_region
    _
  $region25: #{tpu_custom_call.1} parent=0 // pred_fallthru
    _
  // Predicated region
  $region26: #{tpu_custom_call.1} parent=0 // pred_check
    _
  $region27: #{tpu_custom_call.1} parent=0 // pred_check_branch
    %25 = sbr.rel (0) target = $region29
  $region28: #{tpu_custom_call.1} parent=0 // pred_region
    _
  $region29: #{tpu_custom_call.1} parent=0 // pred_fallthru
    _
  %v27 = vld [vmem:[%s1] sm:$0xff]
  %v28 = vld [vmem:[%s1 + $0x8] sm:$0xff]
  %vm29 = vcmask 130048
  %v30 = vsel %vm29, %v27, 0.0
  %31 = vadd.xlane.f32.xlu0 %v30
  %v32 = vpop.xlane.xlu0 %31
  %v33 = vsel %vm29, %v28, 0.0
  %34 = vadd.xlane.f32.xlu0 %v33
  %v35 = vpop.xlane.xlu0 %34
  %v36 = vrcp.pop 16.0
  %v37 = vmul.f32 %v32, %v36
  %v38 = vmul.f32 %v35, %v36
  %v39 = vsub.f32 %v27, %v37
  %v40 = vsub.f32 %v28, %v38
  %v41 = vmul.f32 %v39, %v39
  %v42 = vmul.f32 %v40, %v40
  %v43 = vsel %vm29, %v41, 0.0
  %44 = vadd.xlane.f32.xlu0 %v43
  %v45 = vpop.xlane.xlu0 %44
  %v46 = vsel %vm29, %v42, 0.0
  %47 = vadd.xlane.f32.xlu0 %v46
  %v48 = vpop.xlane.xlu0 %47
  %v49 = vmul.f32 %v45, %v36
  %v50 = vmul.f32 %v48, %v36
  %v51 = vadd.f32 %v49, 1e-05
  %v52 = vadd.f32 %v50, 1e-05
  %v53 = vrsqrt.pop %v51
  %v54 = vrsqrt.pop %v52
  %v55 = vmul.f32 %v39, %v53
  %v56 = vmul.f32 %v40, %v54
  %v57 = vpack.c.bf16 %v56, %v55
  %v58 = vld [vmem:[%s2] sm:$0xff]
  %v59 = vld [vmem:[%s2 + $0x8] sm:$0xff]
  %v60 = vld [vmem:[%s4] sm:$0x3]
  %v62 = vlaneseq
  %v63 = vshrl.u32 %v62, 7
  %v64 = vsub.s32 0, %v63
  %v65 = vrot.slane %v60, %v64
  %v66 = vlaneseq
  %v67 = vshrl.u32 %v66, 7
  %v68 = vsub.s32 1, %v67
  %v69 = vrot.slane %v60, %v68
  %v74 = vunpack.c.l.b16 %v58
  %v75 = vunpack.c.h.b16 %v58
  %v76 = vunpack.c.l.b16 %v59
  %v77 = vunpack.c.h.b16 %v59
  %v78 = vpack.c.b16 %v76, %v74
  %v79 = vpack.c.b16 %v77, %v75
  %v83 = vsel %vm29, %v57, 0
  %85 = vmatprep.subr.bf16.mxu0 %v79
  %86 = vmatpush1.bf16.msra.mxu0 %v78
  %87 = vmatprep.subr.bf16.mxu0 0
  %88 = vmatpush1.bf16.msra.mxu0 0
  %89 = vmatprep.subr.bf16.mxu0 0
  %90 = vmatpush1.bf16.msra.mxu0 0
  %91 = vmatprep.subr.bf16.mxu0 0
  %92 = vmatpush1.bf16.msra.mxu0 0
  %93 = vmatprep.subr.bf16.mxu0 0
  %94 = vmatpush1.bf16.msra.mxu0 0
  %95 = vmatprep.subr.bf16.mxu0 0
  %96 = vmatpush1.bf16.msra.mxu0 0
  %97 = vmatprep.subr.bf16.mxu0 0
  %98 = vmatpush1.bf16.msra.mxu0 0
  %99 = vmatprep.subr.bf16.mxu0 0
  %100 = vmatpush1.bf16.msra.mxu0 0
  %101 = vmatprep.subr.bf16.mxu0 0
  %102 = vmatpush1.bf16.msra.mxu0 0
  %103 = vmatprep.subr.bf16.mxu0 0
  %104 = vmatpush1.bf16.msra.mxu0 0
  %105 = vmatprep.subr.bf16.mxu0 0
  %106 = vmatpush1.bf16.msra.mxu0 0
  %107 = vmatprep.subr.bf16.mxu0 0
  %108 = vmatpush1.bf16.msra.mxu0 0
  %109 = vmatprep.subr.bf16.mxu0 0
  %110 = vmatpush1.bf16.msra.mxu0 0
  %111 = vmatprep.subr.bf16.mxu0 0
  %112 = vmatpush1.bf16.msra.mxu0 0
  %113 = vmatprep.subr.bf16.mxu0 0
  %114 = vmatpush1.bf16.msra.mxu0 0
  %115 = vmatprep.subr.bf16.mxu0 0
  %116 = vmatpush1.bf16.msra.mxu0 0
  %117 = vmatprep.mubr.bf16.mxu0 0
  %118 = vmatmul.mubr.bf16.gmra.mrb[0].mxu0 %v83
  %v119 = vpop.f32.mrb[0].mxu0
  %v120 = vadd.f32 %v65, %v119
  %v121 = vpop.f32.mrb[0].mxu0
  %v122 = vadd.f32 %v69, %v121
  %v123 = vpop.f32.mrb[0].mxu0
  %v124 = vadd.f32 %v65, %v123
  %v125 = vpop.f32.mrb[0].mxu0
  %v126 = vadd.f32 %v69, %v125
  %127 = vdwg.mxu0
  %v130 = vcombine.low %v120, %v122
  %v132 = vunpack.c.l.s4 1983009808
  %v133 = vunpack.c.0.s8 %v132
  %v134 = vlaneseq
  %v135 = vshrl.u32 %v134, 7
  %v136 = vsub.s32 %v133, %v135
  %v137 = vrot.slane %v130, %v136
  %139 = vst [vmem:[#allocation2] sm:$0xf] %v137
  %v140 = vcombine.high %v137, %v137
  %s142 = scalar_lea.vmem [#allocation2], 4
  %143 = vst [vmem:[%s142] sm:$0xf] %v140
  %v144 = vcombine.high %v120, %v122
  %v146 = vunpack.c.l.s4 1983009808
  %v147 = vunpack.c.0.s8 %v146
  %v148 = vlaneseq
  %v149 = vshrl.u32 %v148, 7
  %v150 = vsub.s32 %v147, %v149
  %v151 = vrot.slane %v144, %v150
  %s153 = scalar_lea.vmem [#allocation2], 8
  %154 = vst [vmem:[%s153] sm:$0xf] %v151
  %v155 = vcombine.high %v151, %v151
  %s157 = scalar_lea.vmem [#allocation2], 12
  %158 = vst [vmem:[%s157] sm:$0xf] %v155
  %v161 = vcombine.low %v124, %v126
  %v163 = vunpack.c.l.s4 1983009808
  %v164 = vunpack.c.0.s8 %v163
  %v165 = vlaneseq
  %v166 = vshrl.u32 %v165, 7
  %v167 = vsub.s32 %v164, %v166
  %v168 = vrot.slane %v161, %v167
  %s170 = scalar_lea.vmem [#allocation2], 16
  %171 = vst [vmem:[%s170] sm:$0xf] %v168
  %v172 = vcombine.high %v168, %v168
  %s174 = scalar_lea.vmem [#allocation2], 20
  %175 = vst [vmem:[%s174] sm:$0xf] %v172
  %v176 = vcombine.high %v124, %v126
  %v178 = vunpack.c.l.s4 1983009808
  %v179 = vunpack.c.0.s8 %v178
  %v180 = vlaneseq
  %v181 = vshrl.u32 %v180, 7
  %v182 = vsub.s32 %v179, %v181
  %v183 = vrot.slane %v176, %v182
  %s185 = scalar_lea.vmem [#allocation2], 24
  %186 = vst [vmem:[%s185] sm:$0xf] %v183
  %v187 = vcombine.high %v183, %v183
  %s189 = scalar_lea.vmem [#allocation2], 28
  %190 = vst [vmem:[%s189] sm:$0xf] %v187
  %v191 = vld [vmem:[%s3] sm:$0xf]
  %v192 = vld [vmem:[%s3 + $0x4] sm:$0xf]
  %v193 = vld [vmem:[%s3 + $0x8] sm:$0xf]
  %v194 = vld [vmem:[%s3 + $0xc] sm:$0xf]
  %v195 = vld [vmem:[%s0] sm:$0x3]
  %v196 = vld [vmem:[#allocation2] sm:$0xf]
  %v201 = vunpack.c.l.b16 %v191
  %v202 = vunpack.c.l.b16 %v192
  %v203 = vunpack.c.l.b16 %v193
  %v204 = vunpack.c.l.b16 %v194
  %v205 = vpack.c.b16 %v202, %v201
  %v206 = vpack.c.b16 %v204, %v203
  %vm209 = vcmask 261120
  %v211 = vsel %vm209, 0, 0
  %213 = vmatprep.subr.bf16.mxu0 0
  %214 = vmatpush1.bf16.msra.mxu0 %v205
  %215 = vmatprep.subr.bf16.mxu0 0
  %216 = vmatpush1.bf16.msra.mxu0 %v206
  %217 = vmatprep.subr.bf16.mxu0 0
  %218 = vmatpush1.bf16.msra.mxu0 0
  %219 = vmatprep.subr.bf16.mxu0 0
  %220 = vmatpush1.bf16.msra.mxu0 0
  %221 = vmatprep.subr.bf16.mxu0 0
  %222 = vmatpush1.bf16.msra.mxu0 0
  %223 = vmatprep.subr.bf16.mxu0 0
  %224 = vmatpush1.bf16.msra.mxu0 0
  %225 = vmatprep.subr.bf16.mxu0 0
  %226 = vmatpush1.bf16.msra.mxu0 0
  %227 = vmatprep.subr.bf16.mxu0 0
  %228 = vmatpush1.bf16.msra.mxu0 0
  %229 = vmatprep.subr.bf16.mxu0 0
  %230 = vmatpush1.bf16.msra.mxu0 0
  %231 = vmatprep.subr.bf16.mxu0 0
  %232 = vmatpush1.bf16.msra.mxu0 0
  %233 = vmatprep.subr.bf16.mxu0 0
  %234 = vmatpush1.bf16.msra.mxu0 0
  %235 = vmatprep.subr.bf16.mxu0 0
  %236 = vmatpush1.bf16.msra.mxu0 0
  %237 = vmatprep.subr.bf16.mxu0 0
  %238 = vmatpush1.bf16.msra.mxu0 0
  %239 = vmatprep.subr.bf16.mxu0 0
  %240 = vmatpush1.bf16.msra.mxu0 0
  %241 = vmatprep.subr.bf16.mxu0 0
  %242 = vmatpush1.bf16.msra.mxu0 0
  %243 = vmatprep.subr.bf16.mxu0 0
  %244 = vmatpush1.bf16.msra.mxu0 0
  %245 = vmatprep.mubr.bf16.mxu0 0
  %246 = vmatmul.mubr.bf16.gmra.mrb[0].mxu0 %v211
  %v247 = vpop.f32.mrb[0].mxu0
  %v248 = vadd.f32 0.0, %v247
  %v249 = vpop.f32.mrb[0].mxu0
  %v250 = vpop.f32.mrb[0].mxu0
  %v251 = vpop.f32.mrb[0].mxu0
  %252 = vdwg.mxu0
  %v253 = vadd.f32 %v196, %v248
  %v254 = vmul.f32 %v253, 0.5
  %v255 = vtanh.pop %v254
  %v256 = vmul.f32 %v255, 0.5
  %v257 = vadd.f32 %v256, 0.5
  %v258 = vtanh.pop %v253
  %v259 = vmul.f32 %v257, 0.0
  %261 = vrot.lane.b32.xlu0 %v258, 64
  %v262 = vpop.permute.xlu0 %261
  %v264 = vmul.f32 %v257, %v262
  %266 = vrot.lane.b32.xlu0 %v264, 32
  %v267 = vpop.permute.xlu0 %266
  %v269 = vadd.f32 %v259, %v267
  %v270 = vtanh.pop %v269
  %272 = vrot.lane.b32.xlu0 %v270, 64
  %v273 = vpop.permute.xlu0 %272
  %v275 = vmul.f32 %v257, %v273
  %vm276 = vcmp.eq.s32.totalorder %v195, 0
  %v277 = vsel %vm276, 1, 0
  %278 = vset.pattern.permute.xlu0 0
  %279 = vperm.xlu0 %278, %v277
  %v280 = vpop.permute.xlu0 %279
  %vm281 = vcmp.eq.s32.totalorder %v280, 1
  %v284 = vunpack.c.l.s4 1983009808
  %v285 = vunpack.c.0.s8 %v284
  %v286 = vlaneseq
  %v287 = vshrl.u32 %v286, 7
  %v288 = vsub.s32 %v285, %v287
  %v289 = vrot.slane %v275, %v288
  %290 = vrot.lane.b32.xlu0 %v289, 32
  %v291 = vpop.permute.xlu0 %290
  %v293 = vsel %vm281, %v291, 0.0
  %v296 = vunpack.c.l.s4 1983009808
  %v297 = vunpack.c.0.s8 %v296
  %v298 = vlaneseq
  %v299 = vshrl.u32 %v298, 7
  %v300 = vsub.s32 %v297, %v299
  %v301 = vrot.slane %v196, %v300
  %v302 = vcombine.high %v301, %v301
  %v304 = vsel %vm281, %v302, 0.0
  %v305 = vld [vmem:[%s142] sm:$0xf]
  %v306 = vpack.c.bf16 %v275, %v275
  %308 = vrot.lane.b32.xlu0 %v306, 32
  %v309 = vpop.permute.xlu0 %308
  %v311 = vsel %vm209, %v309, 0
  %313 = vmatprep.subr.bf16.mxu0 0
  %314 = vmatpush1.bf16.msra.mxu0 %v205
  %315 = vmatprep.subr.bf16.mxu0 0
  %316 = vmatpush1.bf16.msra.mxu0 %v206
  %317 = vmatprep.subr.bf16.mxu0 0
  %318 = vmatpush1.bf16.msra.mxu0 0
  %319 = vmatprep.subr.bf16.mxu0 0
  %320 = vmatpush1.bf16.msra.mxu0 0
  %321 = vmatprep.subr.bf16.mxu0 0
  %322 = vmatpush1.bf16.msra.mxu0 0
  %323 = vmatprep.subr.bf16.mxu0 0
  %324 = vmatpush1.bf16.msra.mxu0 0
  %325 = vmatprep.subr.bf16.mxu0 0
  %326 = vmatpush1.bf16.msra.mxu0 0
  %327 = vmatprep.subr.bf16.mxu0 0
  %328 = vmatpush1.bf16.msra.mxu0 0
  %329 = vmatprep.subr.bf16.mxu0 0
  %330 = vmatpush1.bf16.msra.mxu0 0
  %331 = vmatprep.subr.bf16.mxu0 0
  %332 = vmatpush1.bf16.msra.mxu0 0
  %333 = vmatprep.subr.bf16.mxu0 0
  %334 = vmatpush1.bf16.msra.mxu0 0
  %335 = vmatprep.subr.bf16.mxu0 0
  %336 = vmatpush1.bf16.msra.mxu0 0
  %337 = vmatprep.subr.bf16.mxu0 0
  %338 = vmatpush1.bf16.msra.mxu0 0
  %339 = vmatprep.subr.bf16.mxu0 0
  %340 = vmatpush1.bf16.msra.mxu0 0
  %341 = vmatprep.subr.bf16.mxu0 0
  %342 = vmatpush1.bf16.msra.mxu0 0
  %343 = vmatprep.subr.bf16.mxu0 0
  %344 = vmatpush1.bf16.msra.mxu0 0
  %345 = vmatprep.mubr.bf16.mxu0 0
  %346 = vmatmul.mubr.bf16.gmra.mrb[0].mxu0 %v311
  %v347 = vpop.f32.mrb[0].mxu0
  %v348 = vadd.f32 0.0, %v347
  %v349 = vpop.f32.mrb[0].mxu0
  %v350 = vpop.f32.mrb[0].mxu0
  %v351 = vpop.f32.mrb[0].mxu0
  %352 = vdwg.mxu0
  %v353 = vadd.f32 %v305, %v348
  %v354 = vmul.f32 %v353, 0.5
  %v355 = vtanh.pop %v354
  %v356 = vmul.f32 %v355, 0.5
  %v357 = vadd.f32 %v356, 0.5
  %v358 = vtanh.pop %v353
  %v359 = vmul.f32 %v357, %v269
  %361 = vrot.lane.b32.xlu0 %v358, 64
  %v362 = vpop.permute.xlu0 %361
  %v364 = vmul.f32 %v357, %v362
  %366 = vrot.lane.b32.xlu0 %v364, 32
  %v367 = vpop.permute.xlu0 %366
  %v369 = vadd.f32 %v359, %v367
  %v370 = vtanh.pop %v369
  %372 = vrot.lane.b32.xlu0 %v370, 64
  %v373 = vpop.permute.xlu0 %372
  %v375 = vmul.f32 %v357, %v373
  %vm376 = vcmp.eq.s32.totalorder %v195, 1
  %v377 = vsel %vm376, 1, 0
  %378 = vset.pattern.permute.xlu0 0
  %379 = vperm.xlu0 %378, %v377
  %v380 = vpop.permute.xlu0 %379
  %vm381 = vcmp.eq.s32.totalorder %v380, 1
  %v384 = vunpack.c.l.s4 1983009808
  %v385 = vunpack.c.0.s8 %v384
  %v386 = vlaneseq
  %v387 = vshrl.u32 %v386, 7
  %v388 = vsub.s32 %v385, %v387
  %v389 = vrot.slane %v375, %v388
  %390 = vrot.lane.b32.xlu0 %v389, 32
  %v391 = vpop.permute.xlu0 %390
  %v393 = vsel %vm381, %v391, %v293
  %v396 = vunpack.c.l.s4 1983009808
  %v397 = vunpack.c.0.s8 %v396
  %v398 = vlaneseq
  %v399 = vshrl.u32 %v398, 7
  %v400 = vsub.s32 %v397, %v399
  %v401 = vrot.slane %v305, %v400
  %v402 = vcombine.high %v401, %v401
  %v404 = vsel %vm381, %v402, %v304
  %v405 = vld [vmem:[%s153] sm:$0xf]
  %v406 = vpack.c.bf16 %v375, %v375
  %408 = vrot.lane.b32.xlu0 %v406, 32
  %v409 = vpop.permute.xlu0 %408
  %v411 = vsel %vm209, %v409, 0
  %413 = vmatprep.subr.bf16.mxu0 0
  %414 = vmatpush1.bf16.msra.mxu0 %v205
  %415 = vmatprep.subr.bf16.mxu0 0
  %416 = vmatpush1.bf16.msra.mxu0 %v206
  %417 = vmatprep.subr.bf16.mxu0 0
  %418 = vmatpush1.bf16.msra.mxu0 0
  %419 = vmatprep.subr.bf16.mxu0 0
  %420 = vmatpush1.bf16.msra.mxu0 0
  %421 = vmatprep.subr.bf16.mxu0 0
  %422 = vmatpush1.bf16.msra.mxu0 0
  %423 = vmatprep.subr.bf16.mxu0 0
  %424 = vmatpush1.bf16.msra.mxu0 0
  %425 = vmatprep.subr.bf16.mxu0 0
  %426 = vmatpush1.bf16.msra.mxu0 0
  %427 = vmatprep.subr.bf16.mxu0 0
  %428 = vmatpush1.bf16.msra.mxu0 0
  %429 = vmatprep.subr.bf16.mxu0 0
  %430 = vmatpush1.bf16.msra.mxu0 0
  %431 = vmatprep.subr.bf16.mxu0 0
  %432 = vmatpush1.bf16.msra.mxu0 0
  %433 = vmatprep.subr.bf16.mxu0 0
  %434 = vmatpush1.bf16.msra.mxu0 0
  %435 = vmatprep.subr.bf16.mxu0 0
  %436 = vmatpush1.bf16.msra.mxu0 0
  %437 = vmatprep.subr.bf16.mxu0 0
  %438 = vmatpush1.bf16.msra.mxu0 0
  %439 = vmatprep.subr.bf16.mxu0 0
  %440 = vmatpush1.bf16.msra.mxu0 0
  %441 = vmatprep.subr.bf16.mxu0 0
  %442 = vmatpush1.bf16.msra.mxu0 0
  %443 = vmatprep.subr.bf16.mxu0 0
  %444 = vmatpush1.bf16.msra.mxu0 0
  %445 = vmatprep.mubr.bf16.mxu0 0
  %446 = vmatmul.mubr.bf16.gmra.mrb[0].mxu0 %v411
  %v447 = vpop.f32.mrb[0].mxu0
  %v448 = vadd.f32 0.0, %v447
  %v449 = vpop.f32.mrb[0].mxu0
  %v450 = vpop.f32.mrb[0].mxu0
  %v451 = vpop.f32.mrb[0].mxu0
  %452 = vdwg.mxu0
  %v453 = vadd.f32 %v405, %v448
  %v454 = vmul.f32 %v453, 0.5
  %v455 = vtanh.pop %v454
  %v456 = vmul.f32 %v455, 0.5
  %v457 = vadd.f32 %v456, 0.5
  %v458 = vtanh.pop %v453
  %v459 = vmul.f32 %v457, %v369
  %461 = vrot.lane.b32.xlu0 %v458, 64
  %v462 = vpop.permute.xlu0 %461
  %v464 = vmul.f32 %v457, %v462
  %466 = vrot.lane.b32.xlu0 %v464, 32
  %v467 = vpop.permute.xlu0 %466
  %v469 = vadd.f32 %v459, %v467
  %v470 = vtanh.pop %v469
  %472 = vrot.lane.b32.xlu0 %v470, 64
  %v473 = vpop.permute.xlu0 %472
  %v475 = vmul.f32 %v457, %v473
  %vm476 = vcmp.eq.s32.totalorder %v195, 2
  %v477 = vsel %vm476, 1, 0
  %478 = vset.pattern.permute.xlu0 0
  %479 = vperm.xlu0 %478, %v477
  %v480 = vpop.permute.xlu0 %479
  %vm481 = vcmp.eq.s32.totalorder %v480, 1
  %v484 = vunpack.c.l.s4 1983009808
  %v485 = vunpack.c.0.s8 %v484
  %v486 = vlaneseq
  %v487 = vshrl.u32 %v486, 7
  %v488 = vsub.s32 %v485, %v487
  %v489 = vrot.slane %v475, %v488
  %490 = vrot.lane.b32.xlu0 %v489, 32
  %v491 = vpop.permute.xlu0 %490
  %v493 = vsel %vm481, %v491, %v393
  %v496 = vunpack.c.l.s4 1983009808
  %v497 = vunpack.c.0.s8 %v496
  %v498 = vlaneseq
  %v499 = vshrl.u32 %v498, 7
  %v500 = vsub.s32 %v497, %v499
  %v501 = vrot.slane %v405, %v500
  %v502 = vcombine.high %v501, %v501
  %v504 = vsel %vm481, %v502, %v404
  %v505 = vld [vmem:[%s157] sm:$0xf]
  %v506 = vpack.c.bf16 %v475, %v475
  %508 = vrot.lane.b32.xlu0 %v506, 32
  %v509 = vpop.permute.xlu0 %508
  %v511 = vsel %vm209, %v509, 0
  %513 = vmatprep.subr.bf16.mxu0 0
  %514 = vmatpush1.bf16.msra.mxu0 %v205
  %515 = vmatprep.subr.bf16.mxu0 0
  %516 = vmatpush1.bf16.msra.mxu0 %v206
  %517 = vmatprep.subr.bf16.mxu0 0
  %518 = vmatpush1.bf16.msra.mxu0 0
  %519 = vmatprep.subr.bf16.mxu0 0
  %520 = vmatpush1.bf16.msra.mxu0 0
  %521 = vmatprep.subr.bf16.mxu0 0
  %522 = vmatpush1.bf16.msra.mxu0 0
  %523 = vmatprep.subr.bf16.mxu0 0
  %524 = vmatpush1.bf16.msra.mxu0 0
  %525 = vmatprep.subr.bf16.mxu0 0
  %526 = vmatpush1.bf16.msra.mxu0 0
  %527 = vmatprep.subr.bf16.mxu0 0
  %528 = vmatpush1.bf16.msra.mxu0 0
  %529 = vmatprep.subr.bf16.mxu0 0
  %530 = vmatpush1.bf16.msra.mxu0 0
  %531 = vmatprep.subr.bf16.mxu0 0
  %532 = vmatpush1.bf16.msra.mxu0 0
  %533 = vmatprep.subr.bf16.mxu0 0
  %534 = vmatpush1.bf16.msra.mxu0 0
  %535 = vmatprep.subr.bf16.mxu0 0
  %536 = vmatpush1.bf16.msra.mxu0 0
  %537 = vmatprep.subr.bf16.mxu0 0
  %538 = vmatpush1.bf16.msra.mxu0 0
  %539 = vmatprep.subr.bf16.mxu0 0
  %540 = vmatpush1.bf16.msra.mxu0 0
  %541 = vmatprep.subr.bf16.mxu0 0
  %542 = vmatpush1.bf16.msra.mxu0 0
  %543 = vmatprep.subr.bf16.mxu0 0
  %544 = vmatpush1.bf16.msra.mxu0 0
  %545 = vmatprep.mubr.bf16.mxu0 0
  %546 = vmatmul.mubr.bf16.gmra.mrb[0].mxu0 %v511
  %v547 = vpop.f32.mrb[0].mxu0
  %v548 = vadd.f32 0.0, %v547
  %v549 = vpop.f32.mrb[0].mxu0
  %v550 = vpop.f32.mrb[0].mxu0
  %v551 = vpop.f32.mrb[0].mxu0
  %552 = vdwg.mxu0
  %v553 = vadd.f32 %v505, %v548
  %v554 = vmul.f32 %v553, 0.5
  %v555 = vtanh.pop %v554
  %v556 = vmul.f32 %v555, 0.5
  %v557 = vadd.f32 %v556, 0.5
  %v558 = vtanh.pop %v553
  %v559 = vmul.f32 %v557, %v469
  %561 = vrot.lane.b32.xlu0 %v558, 64
  %v562 = vpop.permute.xlu0 %561
  %v564 = vmul.f32 %v557, %v562
  %566 = vrot.lane.b32.xlu0 %v564, 32
  %v567 = vpop.permute.xlu0 %566
  %v569 = vadd.f32 %v559, %v567
  %v570 = vtanh.pop %v569
  %572 = vrot.lane.b32.xlu0 %v570, 64
  %v573 = vpop.permute.xlu0 %572
  %v575 = vmul.f32 %v557, %v573
  %vm576 = vcmp.eq.s32.totalorder %v195, 3
  %v577 = vsel %vm576, 1, 0
  %578 = vset.pattern.permute.xlu0 0
  %579 = vperm.xlu0 %578, %v577
  %v580 = vpop.permute.xlu0 %579
  %vm581 = vcmp.eq.s32.totalorder %v580, 1
  %v584 = vunpack.c.l.s4 1983009808
  %v585 = vunpack.c.0.s8 %v584
  %v586 = vlaneseq
  %v587 = vshrl.u32 %v586, 7
  %v588 = vsub.s32 %v585, %v587
  %v589 = vrot.slane %v575, %v588
  %590 = vrot.lane.b32.xlu0 %v589, 32
  %v591 = vpop.permute.xlu0 %590
  %v593 = vsel %vm581, %v591, %v493
  %v596 = vunpack.c.l.s4 1983009808
  %v597 = vunpack.c.0.s8 %v596
  %v598 = vlaneseq
  %v599 = vshrl.u32 %v598, 7
  %v600 = vsub.s32 %v597, %v599
  %v601 = vrot.slane %v505, %v600
  %v602 = vcombine.high %v601, %v601
  %v604 = vsel %vm581, %v602, %v504
  %v605 = vld [vmem:[%s170] sm:$0xf]
  %v606 = vpack.c.bf16 %v575, %v575
  %608 = vrot.lane.b32.xlu0 %v606, 32
  %v609 = vpop.permute.xlu0 %608
  %v611 = vsel %vm209, %v609, 0
  %613 = vmatprep.subr.bf16.mxu0 0
  %614 = vmatpush1.bf16.msra.mxu0 %v205
  %615 = vmatprep.subr.bf16.mxu0 0
  %616 = vmatpush1.bf16.msra.mxu0 %v206
  %617 = vmatprep.subr.bf16.mxu0 0
  %618 = vmatpush1.bf16.msra.mxu0 0
  %619 = vmatprep.subr.bf16.mxu0 0
  %620 = vmatpush1.bf16.msra.mxu0 0
  %621 = vmatprep.subr.bf16.mxu0 0
  %622 = vmatpush1.bf16.msra.mxu0 0
  %623 = vmatprep.subr.bf16.mxu0 0
  %624 = vmatpush1.bf16.msra.mxu0 0
  %625 = vmatprep.subr.bf16.mxu0 0
  %626 = vmatpush1.bf16.msra.mxu0 0
  %627 = vmatprep.subr.bf16.mxu0 0
  %628 = vmatpush1.bf16.msra.mxu0 0
  %629 = vmatprep.subr.bf16.mxu0 0
  %630 = vmatpush1.bf16.msra.mxu0 0
  %631 = vmatprep.subr.bf16.mxu0 0
  %632 = vmatpush1.bf16.msra.mxu0 0
  %633 = vmatprep.subr.bf16.mxu0 0
  %634 = vmatpush1.bf16.msra.mxu0 0
  %635 = vmatprep.subr.bf16.mxu0 0
  %636 = vmatpush1.bf16.msra.mxu0 0
  %637 = vmatprep.subr.bf16.mxu0 0
  %638 = vmatpush1.bf16.msra.mxu0 0
  %639 = vmatprep.subr.bf16.mxu0 0
  %640 = vmatpush1.bf16.msra.mxu0 0
  %641 = vmatprep.subr.bf16.mxu0 0
  %642 = vmatpush1.bf16.msra.mxu0 0
  %643 = vmatprep.subr.bf16.mxu0 0
  %644 = vmatpush1.bf16.msra.mxu0 0
  %645 = vmatprep.mubr.bf16.mxu0 0
  %646 = vmatmul.mubr.bf16.gmra.mrb[0].mxu0 %v611
  %v647 = vpop.f32.mrb[0].mxu0
  %v648 = vadd.f32 0.0, %v647
  %v649 = vpop.f32.mrb[0].mxu0
  %v650 = vpop.f32.mrb[0].mxu0
  %v651 = vpop.f32.mrb[0].mxu0
  %652 = vdwg.mxu0
  %v653 = vadd.f32 %v605, %v648
  %v654 = vmul.f32 %v653, 0.5
  %v655 = vtanh.pop %v654
  %v656 = vmul.f32 %v655, 0.5
  %v657 = vadd.f32 %v656, 0.5
  %v658 = vtanh.pop %v653
  %v659 = vmul.f32 %v657, %v569
  %661 = vrot.lane.b32.xlu0 %v658, 64
  %v662 = vpop.permute.xlu0 %661
  %v664 = vmul.f32 %v657, %v662
  %666 = vrot.lane.b32.xlu0 %v664, 32
  %v667 = vpop.permute.xlu0 %666
  %v669 = vadd.f32 %v659, %v667
  %v670 = vtanh.pop %v669
  %672 = vrot.lane.b32.xlu0 %v670, 64
  %v673 = vpop.permute.xlu0 %672
  %v675 = vmul.f32 %v657, %v673
  %vm676 = vcmp.eq.s32.totalorder %v195, 4
  %v677 = vsel %vm676, 1, 0
  %678 = vset.pattern.permute.xlu0 0
  %679 = vperm.xlu0 %678, %v677
  %v680 = vpop.permute.xlu0 %679
  %vm681 = vcmp.eq.s32.totalorder %v680, 1
  %v684 = vunpack.c.l.s4 1983009808
  %v685 = vunpack.c.0.s8 %v684
  %v686 = vlaneseq
  %v687 = vshrl.u32 %v686, 7
  %v688 = vsub.s32 %v685, %v687
  %v689 = vrot.slane %v675, %v688
  %690 = vrot.lane.b32.xlu0 %v689, 32
  %v691 = vpop.permute.xlu0 %690
  %v693 = vsel %vm681, %v691, %v593
  %v696 = vunpack.c.l.s4 1983009808
  %v697 = vunpack.c.0.s8 %v696
  %v698 = vlaneseq
  %v699 = vshrl.u32 %v698, 7
  %v700 = vsub.s32 %v697, %v699
  %v701 = vrot.slane %v605, %v700
  %v702 = vcombine.high %v701, %v701
  %v704 = vsel %vm681, %v702, %v604
  %v705 = vld [vmem:[%s174] sm:$0xf]
  %v706 = vpack.c.bf16 %v675, %v675
  %708 = vrot.lane.b32.xlu0 %v706, 32
  %v709 = vpop.permute.xlu0 %708
  %v711 = vsel %vm209, %v709, 0
  %713 = vmatprep.subr.bf16.mxu0 0
  %714 = vmatpush1.bf16.msra.mxu0 %v205
  %715 = vmatprep.subr.bf16.mxu0 0
  %716 = vmatpush1.bf16.msra.mxu0 %v206
  %717 = vmatprep.subr.bf16.mxu0 0
  %718 = vmatpush1.bf16.msra.mxu0 0
  %719 = vmatprep.subr.bf16.mxu0 0
  %720 = vmatpush1.bf16.msra.mxu0 0
  %721 = vmatprep.subr.bf16.mxu0 0
  %722 = vmatpush1.bf16.msra.mxu0 0
  %723 = vmatprep.subr.bf16.mxu0 0
  %724 = vmatpush1.bf16.msra.mxu0 0
  %725 = vmatprep.subr.bf16.mxu0 0
  %726 = vmatpush1.bf16.msra.mxu0 0
  %727 = vmatprep.subr.bf16.mxu0 0
  %728 = vmatpush1.bf16.msra.mxu0 0
  %729 = vmatprep.subr.bf16.mxu0 0
  %730 = vmatpush1.bf16.msra.mxu0 0
  %731 = vmatprep.subr.bf16.mxu0 0
  %732 = vmatpush1.bf16.msra.mxu0 0
  %733 = vmatprep.subr.bf16.mxu0 0
  %734 = vmatpush1.bf16.msra.mxu0 0
  %735 = vmatprep.subr.bf16.mxu0 0
  %736 = vmatpush1.bf16.msra.mxu0 0
  %737 = vmatprep.subr.bf16.mxu0 0
  %738 = vmatpush1.bf16.msra.mxu0 0
  %739 = vmatprep.subr.bf16.mxu0 0
  %740 = vmatpush1.bf16.msra.mxu0 0
  %741 = vmatprep.subr.bf16.mxu0 0
  %742 = vmatpush1.bf16.msra.mxu0 0
  %743 = vmatprep.subr.bf16.mxu0 0
  %744 = vmatpush1.bf16.msra.mxu0 0
  %745 = vmatprep.mubr.bf16.mxu0 0
  %746 = vmatmul.mubr.bf16.gmra.mrb[0].mxu0 %v711
  %v747 = vpop.f32.mrb[0].mxu0
  %v748 = vadd.f32 0.0, %v747
  %v749 = vpop.f32.mrb[0].mxu0
  %v750 = vpop.f32.mrb[0].mxu0
  %v751 = vpop.f32.mrb[0].mxu0
  %752 = vdwg.mxu0
  %v753 = vadd.f32 %v705, %v748
  %v754 = vmul.f32 %v753, 0.5
  %v755 = vtanh.pop %v754
  %v756 = vmul.f32 %v755, 0.5
  %v757 = vadd.f32 %v756, 0.5
  %v758 = vtanh.pop %v753
  %v759 = vmul.f32 %v757, %v669
  %761 = vrot.lane.b32.xlu0 %v758, 64
  %v762 = vpop.permute.xlu0 %761
  %v764 = vmul.f32 %v757, %v762
  %766 = vrot.lane.b32.xlu0 %v764, 32
  %v767 = vpop.permute.xlu0 %766
  %v769 = vadd.f32 %v759, %v767
  %v770 = vtanh.pop %v769
  %772 = vrot.lane.b32.xlu0 %v770, 64
  %v773 = vpop.permute.xlu0 %772
  %v775 = vmul.f32 %v757, %v773
  %vm776 = vcmp.eq.s32.totalorder %v195, 5
  %v777 = vsel %vm776, 1, 0
  %778 = vset.pattern.permute.xlu0 0
  %779 = vperm.xlu0 %778, %v777
  %v780 = vpop.permute.xlu0 %779
  %vm781 = vcmp.eq.s32.totalorder %v780, 1
  %v784 = vunpack.c.l.s4 1983009808
  %v785 = vunpack.c.0.s8 %v784
  %v786 = vlaneseq
  %v787 = vshrl.u32 %v786, 7
  %v788 = vsub.s32 %v785, %v787
  %v789 = vrot.slane %v775, %v788
  %790 = vrot.lane.b32.xlu0 %v789, 32
  %v791 = vpop.permute.xlu0 %790
  %v793 = vsel %vm781, %v791, %v693
  %v796 = vunpack.c.l.s4 1983009808
  %v797 = vunpack.c.0.s8 %v796
  %v798 = vlaneseq
  %v799 = vshrl.u32 %v798, 7
  %v800 = vsub.s32 %v797, %v799
  %v801 = vrot.slane %v705, %v800
  %v802 = vcombine.high %v801, %v801
  %v804 = vsel %vm781, %v802, %v704
  %v805 = vld [vmem:[%s185] sm:$0xf]
  %v806 = vpack.c.bf16 %v775, %v775
  %808 = vrot.lane.b32.xlu0 %v806, 32
  %v809 = vpop.permute.xlu0 %808
  %v811 = vsel %vm209, %v809, 0
  %813 = vmatprep.subr.bf16.mxu0 0
  %814 = vmatpush1.bf16.msra.mxu0 %v205
  %815 = vmatprep.subr.bf16.mxu0 0
  %816 = vmatpush1.bf16.msra.mxu0 %v206
  %817 = vmatprep.subr.bf16.mxu0 0
  %818 = vmatpush1.bf16.msra.mxu0 0
  %819 = vmatprep.subr.bf16.mxu0 0
  %820 = vmatpush1.bf16.msra.mxu0 0
  %821 = vmatprep.subr.bf16.mxu0 0
  %822 = vmatpush1.bf16.msra.mxu0 0
  %823 = vmatprep.subr.bf16.mxu0 0
  %824 = vmatpush1.bf16.msra.mxu0 0
  %825 = vmatprep.subr.bf16.mxu0 0
  %826 = vmatpush1.bf16.msra.mxu0 0
  %827 = vmatprep.subr.bf16.mxu0 0
  %828 = vmatpush1.bf16.msra.mxu0 0
  %829 = vmatprep.subr.bf16.mxu0 0
  %830 = vmatpush1.bf16.msra.mxu0 0
  %831 = vmatprep.subr.bf16.mxu0 0
  %832 = vmatpush1.bf16.msra.mxu0 0
  %833 = vmatprep.subr.bf16.mxu0 0
  %834 = vmatpush1.bf16.msra.mxu0 0
  %835 = vmatprep.subr.bf16.mxu0 0
  %836 = vmatpush1.bf16.msra.mxu0 0
  %837 = vmatprep.subr.bf16.mxu0 0
  %838 = vmatpush1.bf16.msra.mxu0 0
  %839 = vmatprep.subr.bf16.mxu0 0
  %840 = vmatpush1.bf16.msra.mxu0 0
  %841 = vmatprep.subr.bf16.mxu0 0
  %842 = vmatpush1.bf16.msra.mxu0 0
  %843 = vmatprep.subr.bf16.mxu0 0
  %844 = vmatpush1.bf16.msra.mxu0 0
  %845 = vmatprep.mubr.bf16.mxu0 0
  %846 = vmatmul.mubr.bf16.gmra.mrb[0].mxu0 %v811
  %v847 = vpop.f32.mrb[0].mxu0
  %v848 = vadd.f32 0.0, %v847
  %v849 = vpop.f32.mrb[0].mxu0
  %v850 = vpop.f32.mrb[0].mxu0
  %v851 = vpop.f32.mrb[0].mxu0
  %852 = vdwg.mxu0
  %v853 = vadd.f32 %v805, %v848
  %v854 = vmul.f32 %v853, 0.5
  %v855 = vtanh.pop %v854
  %v856 = vmul.f32 %v855, 0.5
  %v857 = vadd.f32 %v856, 0.5
  %v858 = vtanh.pop %v853
  %v859 = vmul.f32 %v857, %v769
  %861 = vrot.lane.b32.xlu0 %v858, 64
  %v862 = vpop.permute.xlu0 %861
  %v864 = vmul.f32 %v857, %v862
  %866 = vrot.lane.b32.xlu0 %v864, 32
  %v867 = vpop.permute.xlu0 %866
  %v869 = vadd.f32 %v859, %v867
  %v870 = vtanh.pop %v869
  %872 = vrot.lane.b32.xlu0 %v870, 64
  %v873 = vpop.permute.xlu0 %872
  %v875 = vmul.f32 %v857, %v873
  %vm876 = vcmp.eq.s32.totalorder %v195, 6
  %v877 = vsel %vm876, 1, 0
  %878 = vset.pattern.permute.xlu0 0
  %879 = vperm.xlu0 %878, %v877
  %v880 = vpop.permute.xlu0 %879
  %vm881 = vcmp.eq.s32.totalorder %v880, 1
  %v884 = vunpack.c.l.s4 1983009808
  %v885 = vunpack.c.0.s8 %v884
  %v886 = vlaneseq
  %v887 = vshrl.u32 %v886, 7
  %v888 = vsub.s32 %v885, %v887
  %v889 = vrot.slane %v875, %v888
  %890 = vrot.lane.b32.xlu0 %v889, 32
  %v891 = vpop.permute.xlu0 %890
  %v893 = vsel %vm881, %v891, %v793
  %v896 = vunpack.c.l.s4 1983009808
  %v897 = vunpack.c.0.s8 %v896
  %v898 = vlaneseq
  %v899 = vshrl.u32 %v898, 7
  %v900 = vsub.s32 %v897, %v899
  %v901 = vrot.slane %v805, %v900
  %v902 = vcombine.high %v901, %v901
  %v904 = vsel %vm881, %v902, %v804
  %v905 = vld [vmem:[%s189] sm:$0xf]
  %v906 = vpack.c.bf16 %v875, %v875
  %908 = vrot.lane.b32.xlu0 %v906, 32
  %v909 = vpop.permute.xlu0 %908
  %v911 = vsel %vm209, %v909, 0
  %913 = vmatprep.subr.bf16.mxu0 0
  %914 = vmatpush1.bf16.msra.mxu0 %v205
  %915 = vmatprep.subr.bf16.mxu0 0
  %916 = vmatpush1.bf16.msra.mxu0 %v206
  %917 = vmatprep.subr.bf16.mxu0 0
  %918 = vmatpush1.bf16.msra.mxu0 0
  %919 = vmatprep.subr.bf16.mxu0 0
  %920 = vmatpush1.bf16.msra.mxu0 0
  %921 = vmatprep.subr.bf16.mxu0 0
  %922 = vmatpush1.bf16.msra.mxu0 0
  %923 = vmatprep.subr.bf16.mxu0 0
  %924 = vmatpush1.bf16.msra.mxu0 0
  %925 = vmatprep.subr.bf16.mxu0 0
  %926 = vmatpush1.bf16.msra.mxu0 0
  %927 = vmatprep.subr.bf16.mxu0 0
  %928 = vmatpush1.bf16.msra.mxu0 0
  %929 = vmatprep.subr.bf16.mxu0 0
  %930 = vmatpush1.bf16.msra.mxu0 0
  %931 = vmatprep.subr.bf16.mxu0 0
  %932 = vmatpush1.bf16.msra.mxu0 0
  %933 = vmatprep.subr.bf16.mxu0 0
  %934 = vmatpush1.bf16.msra.mxu0 0
  %935 = vmatprep.subr.bf16.mxu0 0
  %936 = vmatpush1.bf16.msra.mxu0 0
  %937 = vmatprep.subr.bf16.mxu0 0
  %938 = vmatpush1.bf16.msra.mxu0 0
  %939 = vmatprep.subr.bf16.mxu0 0
  %940 = vmatpush1.bf16.msra.mxu0 0
  %941 = vmatprep.subr.bf16.mxu0 0
  %942 = vmatpush1.bf16.msra.mxu0 0
  %943 = vmatprep.subr.bf16.mxu0 0
  %944 = vmatpush1.bf16.msra.mxu0 0
  %945 = vmatprep.mubr.bf16.mxu0 0
  %946 = vmatmul.mubr.bf16.gmra.mrb[0].mxu0 %v911
  %v947 = vpop.f32.mrb[0].mxu0
  %v948 = vadd.f32 0.0, %v947
  %v949 = vpop.f32.mrb[0].mxu0
  %v950 = vpop.f32.mrb[0].mxu0
  %v951 = vpop.f32.mrb[0].mxu0
  %952 = vdwg.mxu0
  %v953 = vadd.f32 %v905, %v948
  %v954 = vmul.f32 %v953, 0.5
  %v955 = vtanh.pop %v954
  %v956 = vmul.f32 %v955, 0.5
  %v957 = vadd.f32 %v956, 0.5
  %v958 = vtanh.pop %v953
  %v959 = vmul.f32 %v957, %v869
  %961 = vrot.lane.b32.xlu0 %v958, 64
  %v962 = vpop.permute.xlu0 %961
  %v964 = vmul.f32 %v957, %v962
  %966 = vrot.lane.b32.xlu0 %v964, 32
  %v967 = vpop.permute.xlu0 %966
  %v969 = vadd.f32 %v959, %v967
  %v970 = vtanh.pop %v969
  %972 = vrot.lane.b32.xlu0 %v970, 64
  %v973 = vpop.permute.xlu0 %972
  %v975 = vmul.f32 %v957, %v973
  %vm976 = vcmp.eq.s32.totalorder %v195, 7
  %v977 = vsel %vm976, 1, 0
  %978 = vset.pattern.permute.xlu0 0
  %979 = vperm.xlu0 %978, %v977
  %v980 = vpop.permute.xlu0 %979
  %vm981 = vcmp.eq.s32.totalorder %v980, 1
  %v984 = vunpack.c.l.s4 1983009808
  %v985 = vunpack.c.0.s8 %v984
  %v986 = vlaneseq
  %v987 = vshrl.u32 %v986, 7
  %v988 = vsub.s32 %v985, %v987
  %v989 = vrot.slane %v975, %v988
  %990 = vrot.lane.b32.xlu0 %v989, 32
  %v991 = vpop.permute.xlu0 %990
  %v993 = vsel %vm981, %v991, %v893
  %v996 = vunpack.c.l.s4 1983009808
  %v997 = vunpack.c.0.s8 %v996
  %v998 = vlaneseq
  %v999 = vshrl.u32 %v998, 7
  %v1000 = vsub.s32 %v997, %v999
  %v1001 = vrot.slane %v905, %v1000
  %v1002 = vcombine.high %v1001, %v1001
  %v1004 = vsel %vm981, %v1002, %v904
  %v1005 = vmul.f32 %v1004, 0.5
  %v1006 = vtanh.pop %v1005
  %v1007 = vmul.f32 %v1006, 0.5
  %v1008 = vadd.f32 %v1007, 0.5
  %v1009 = vtanh.pop %v1004
  %1011 = vrot.lane.b32.xlu0 %v1009, 64
  %v1012 = vpop.permute.xlu0 %1011
  %v1014 = vmul.f32 %v1008, %v1012
  %v1015 = vtanh.pop %v1014
  %1017 = vrot.lane.b32.xlu0 %v1015, 96
  %v1018 = vpop.permute.xlu0 %1017
  %v1020 = vmul.f32 %v1008, %v1018
  %1022 = vrot.lane.b32.xlu0 %v1020, 64
  %v1023 = vpop.permute.xlu0 %1022
  %v1025 = vsel %vm209, %v993, %v1023
  %v1026 = vld [vmem:[%s5] sm:$0xff]
  %v1027 = vld [vmem:[%s5 + $0x8] sm:$0xff]
  %v1028 = vld [vmem:[%s5 + $0x10] sm:$0xff]
  %v1029 = vld [vmem:[%s5 + $0x18] sm:$0xff]
  %v1030 = vld [vmem:[%s5 + $0x20] sm:$0xff]
  %v1031 = vld [vmem:[%s5 + $0x28] sm:$0xff]
  %v1032 = vld [vmem:[%s5 + $0x30] sm:$0xff]
  %v1033 = vld [vmem:[%s5 + $0x38] sm:$0xff]
  %v1034 = vld [vmem:[%s6] sm:$0x1]
  %v1035 = vlaneseq
  %v1036 = vshrl.u32 %v1035, 7
  %v1037 = vsub.s32 0, %v1036
  %v1038 = vrot.slane %v1034, %v1037
  %vm1039 = vcmask 523264
  %v1041 = vsel %vm1039, %v1025, 0
  %1043 = vmatprep.subr.mxu0 0.0
  %1044 = vmatpush1.msra.mxu0 %v1026
  %1045 = vmatprep.subr.mxu0 0.0
  %1046 = vmatpush1.msra.mxu0 %v1027
  %1047 = vmatprep.subr.mxu0 0.0
  %1048 = vmatpush1.msra.mxu0 %v1028
  %1049 = vmatprep.subr.mxu0 0.0
  %1050 = vmatpush1.msra.mxu0 %v1029
  %1051 = vmatprep.subr.mxu0 0.0
  %1052 = vmatpush1.msra.mxu0 %v1030
  %1053 = vmatprep.subr.mxu0 0.0
  %1054 = vmatpush1.msra.mxu0 %v1031
  %1055 = vmatprep.subr.mxu0 0.0
  %1056 = vmatpush1.msra.mxu0 %v1032
  %1057 = vmatprep.subr.mxu0 0.0
  %1058 = vmatpush1.msra.mxu0 %v1033
  %1059 = vmatprep.subr.mxu0 0.0
  %1060 = vmatpush1.msra.mxu0 0.0
  %1061 = vmatprep.subr.mxu0 0.0
  %1062 = vmatpush1.msra.mxu0 0.0
  %1063 = vmatprep.subr.mxu0 0.0
  %1064 = vmatpush1.msra.mxu0 0.0
  %1065 = vmatprep.subr.mxu0 0.0
  %1066 = vmatpush1.msra.mxu0 0.0
  %1067 = vmatprep.subr.mxu0 0.0
  %1068 = vmatpush1.msra.mxu0 0.0
  %1069 = vmatprep.subr.mxu0 0.0
  %1070 = vmatpush1.msra.mxu0 0.0
  %1071 = vmatprep.subr.mxu0 0.0
  %1072 = vmatpush1.msra.mxu0 0.0
  %1073 = vmatprep.subr.mxu0 0.0
  %1074 = vmatpush1.msra.mxu0 0.0
  %1075 = vmatprep.subr.mxu0 0.0
  %1076 = vmatpush1.msra.mxu0 0.0
  %1077 = vmatprep.subr.mxu0 0.0
  %1078 = vmatpush1.msra.mxu0 0.0
  %1079 = vmatprep.subr.mxu0 0.0
  %1080 = vmatpush1.msra.mxu0 0.0
  %1081 = vmatprep.subr.mxu0 0.0
  %1082 = vmatpush1.msra.mxu0 0.0
  %1083 = vmatprep.subr.mxu0 0.0
  %1084 = vmatpush1.msra.mxu0 0.0
  %1085 = vmatprep.subr.mxu0 0.0
  %1086 = vmatpush1.msra.mxu0 0.0
  %1087 = vmatprep.subr.mxu0 0.0
  %1088 = vmatpush1.msra.mxu0 0.0
  %1089 = vmatprep.subr.mxu0 0.0
  %1090 = vmatpush1.msra.mxu0 0.0
  %1091 = vmatprep.subr.mxu0 0.0
  %1092 = vmatpush1.msra.mxu0 0.0
  %1093 = vmatprep.subr.mxu0 0.0
  %1094 = vmatpush1.msra.mxu0 0.0
  %1095 = vmatprep.subr.mxu0 0.0
  %1096 = vmatpush1.msra.mxu0 0.0
  %1097 = vmatprep.subr.mxu0 0.0
  %1098 = vmatpush1.msra.mxu0 0.0
  %1099 = vmatprep.subr.mxu0 0.0
  %1100 = vmatpush1.msra.mxu0 0.0
  %1101 = vmatprep.subr.mxu0 0.0
  %1102 = vmatpush1.msra.mxu0 0.0
  %1103 = vmatprep.subr.mxu0 0.0
  %1104 = vmatpush1.msra.mxu0 0.0
  %1105 = vmatprep.subr.mxu0 0.0
  %1106 = vmatpush1.msra.mxu0 0.0
  %1107 = vmatprep.mubr.f32.mxu0 0.0
  %1108 = vmatmul.mubr.f32.gmra.mrb[0].mxu0 %v1041
  %v1109 = vpop.f32.mrb[0].mxu0
  %v1110 = vadd.f32 %v1038, %v1109
  %v1111 = vpop.f32.mrb[0].mxu0
  %1112 = vdwg.mxu0
  %vm1113 = vcmask 254976
  %v1114 = vsel %vm1113, %v1110, 0.0
  %1115 = vadd.xlane.f32.xlu0 %v1114
  %v1116 = vpop.xlane.xlu0 %1115
  %v1117 = vrcp.pop 32.0
  %v1118 = vmul.f32 %v1116, %v1117
  %v1119 = vsub.f32 %v1110, %v1118
  %v1120 = vmul.f32 %v1119, %v1119
  %v1121 = vsel %vm1113, %v1120, 0.0
  %1122 = vadd.xlane.f32.xlu0 %v1121
  %v1123 = vpop.xlane.xlu0 %1122
  %v1124 = vmul.f32 %v1123, %v1117
  %v1125 = vadd.f32 %v1124, 1e-05
  %v1126 = vrsqrt.pop %v1125
  %v1127 = vmul.f32 %v1119, %v1126
  %v1128 = vld [vmem:[%s6 + $0x1] sm:$0x1]
  %v1129 = vlaneseq
  %v1130 = vshrl.u32 %v1129, 7
  %v1131 = vsub.s32 0, %v1130
  %v1132 = vrot.slane %v1128, %v1131
  %v1133 = vmul.f32 %v1127, %v1132
  %v1134 = vld [vmem:[%s6 + $0x2] sm:$0x1]
  %v1135 = vlaneseq
  %v1136 = vshrl.u32 %v1135, 7
  %v1137 = vsub.s32 0, %v1136
  %v1138 = vrot.slane %v1134, %v1137
  %v1139 = vadd.f32 %v1133, %v1138
  %v1140 = vmax.f32 %v1139, 0.0
  %v1141 = vld [vmem:[%s6 + $0x3] sm:$0x1]
  %v1142 = vlaneseq
  %v1143 = vshrl.u32 %v1142, 7
  %v1144 = vsub.s32 0, %v1143
  %v1145 = vrot.slane %v1141, %v1144
  %v1146 = vmul.f32 %v1140, %v1145
  %v1147 = vsel %vm1113, %v1146, 0.0
  %1148 = vadd.xlane.f32.xlu0 %v1147
  %v1149 = vpop.xlane.xlu0 %1148
  %v1150 = vld [vmem:[%s6 + $0x4] sm:$0x1]
  %v1151 = vlaneseq
  %v1152 = vshrl.u32 %v1151, 7
  %v1153 = vsub.s32 0, %v1152
  %v1154 = vrot.slane %v1150, %v1153
  %v1155 = vadd.f32 %v1149, %v1154
  %vm1156 = vcmask 1024
  %1157 = vst.msk [vmem:[%s7] sm:$0x3] %vm1156, %v1155
  // Predicated region
  $region30: #{tpu_custom_call.1} parent=0 // pred_check
    _
  $region31: #{tpu_custom_call.1} parent=0 // pred_check_branch
    %1159 = sbr.rel (0) target = $region33
  $region32: #{tpu_custom_call.1} parent=0 // pred_region
    _
  $region33: #{tpu_custom_call.1} parent=0 // pred_fallthru
    _
  // Predicated region
  $region34: #{tpu_custom_call.1} parent=0 // pred_check
    _
  $region35: #{tpu_custom_call.1} parent=0 // pred_check_branch
    %1161 = sbr.rel (0) target = $region37
  $region36: #{tpu_custom_call.1} parent=0 // pred_region
    _
  $region37: #{tpu_custom_call.1} parent=0 // pred_fallthru
    _

</llo_original>
